<compile_context>
chip_gen: v6e
topology: v6e:2x2x1
jax: 0.10.0
libtpu: 0.0.40
codegen_flags: <defaults>
</compile_context>

<pallas_src>
import math
import numpy as np
import jax
import jax.numpy as jnp
from jax import lax
from jax.experimental import pallas as pl
from jax.experimental.pallas import tpu as pltpu

MOVING_AVG_SCALES = [3, 7, 14]
NUM_FREQ = 4
MAX_TIME = 200.0
KL_LAMBDA = 1e-3


def build_avg_matrix(S, w):
    """[S,S] matrix M s.t. (M @ x)[t] == reflect-padded window-w moving avg of x at t."""
    pad_l = w // 2
    M = np.zeros((S, S), np.float32)
    for t in range(S):
        for j in range(w):
            i = t + j - pad_l
            if i < 0:
                i = -i
            elif i >= S:
                i = 2 * (S - 1) - i
            M[t, i] += 1.0 / w
    return M


def make_moe_kernel(B, S, P, F, E, top_k):
    GF = F + 2 * NUM_FREQ          # gate input feature count
    BF = B * F                     # lane width of the expert output

    def kernel(gin_ref, sc_ref, ph_ref, x_ref, weff_ref, wgbd_ref, bg_ref,
               o_ref, kl_ref):
        # ---- gate input: rows [0, F*P) are raw features, rows [F*P, GF*P) are
        #      sinusoid stage encodings of the fermentation hour;
        #      cos(x) = sin(x + pi/2).  One iota mask, no concatenates. ----
        gin = gin_ref[...]                                              # [GF*P, B*F]
        row = lax.broadcasted_iota(jnp.int32, (GF * P, BF), 0)
        xc = jnp.where(row < F * P, gin,
                       jnp.sin(gin * sc_ref[...] + ph_ref[...]))

        # ---- gate logits: ONE contraction with the block-diagonal gate weight
        #      -> rows are (expert, timestep), same layout as the expert matmul. ----
        logits = (jnp.dot(wgbd_ref[...], xc, preferred_element_type=jnp.float32)
                  + bg_ref[...])                                        # [E*P, B*F]
        l3 = logits.reshape(E, P, BF)       # leading-dim split only (layout no-op)

        # ---- softmax over experts (leading axis): slab-wise VPU ops, no XLU. ----
        mx = jnp.max(l3, axis=0, keepdims=True)
        shifted = l3 - mx
        ex = jnp.exp(shifted)
        sum_ex = jnp.sum(ex, axis=0, keepdims=True)
        gs = ex / sum_ex                                                # softmax
        log_gs = shifted - jnp.log(sum_ex)                              # log-softmax (reused)

        # ---- KL(uniform || gate), reduction='batchmean' (divide by B).
        #      Columns are replicated over the F features -> also divide by F. ----
        u = 1.0 / E
        kl_ref[0, 0] = (KL_LAMBDA / (B * F)) * jnp.sum(u * (math.log(u) - log_gs))

        # ---- top-k over experts (lowest-index tie-break) + renormalize ----
        idxs = lax.broadcasted_iota(jnp.int32, (E, P, BF), 0)
        work = gs
        keep = jnp.zeros_like(gs)
        for _ in range(top_k):
            cur_max = jnp.max(work, axis=0, keepdims=True)
            is_max = work == cur_max
            first = jnp.min(jnp.where(is_max, idxs, E), axis=0, keepdims=True)
            sel = idxs == first
            keep = keep + jnp.where(sel, gs, 0.0)
            work = jnp.where(sel, -jnp.inf, work)
        gate = keep / jnp.sum(keep, axis=0, keepdims=True)              # [E, P, BF]

        # ---- stacked expert matmul; bias folded in via the ones row of x_aug ----
        y = jnp.dot(weff_ref[...], x_ref[...],
                    preferred_element_type=jnp.float32)                 # [E*P, B*F]

        # ---- gated mixture: weighted reduce over the expert (leading) axis ----
        o_ref[...] = jnp.sum(gate * y.reshape(E, P, BF),
                             axis=0).astype(o_ref.dtype)                # [P, B*F]

    return kernel


def fold_params(params, seq_len, pred_len):
    """Data-independent folding — compute ONCE per parameter set (hoisted out of
    the per-forward hot path)."""
    S, P = seq_len, pred_len
    Wl, bl, Ws, bs = params["Wl"], params["bl"], params["Ws"], params["bs"]
    Wg, bg = params["Wg"], params["bg"]
    Mavg = params["Mavg"]
    E = Wl.shape[0]
    F = Wg.shape[1] - 2 * NUM_FREQ
    GF = F + 2 * NUM_FREQ

    # Moving-average decomposition + per-expert linears folded into one weight,
    # expert bias appended as an extra column (consumed by a ones row on x).
    A_sum = jnp.sum(Mavg, axis=0)                                   # [S, S]
    short_op = jnp.eye(S, dtype=jnp.float32) - A_sum                # x -> short trend
    W_eff = (jnp.einsum("ept,tu->epu", Ws, short_op)
             + jnp.einsum("espt,stu->epu", Wl, Mavg))               # [E, P, S]
    b_eff = bs + jnp.sum(bl, axis=1)                                # [E, P, 1]
    weff_aug = jnp.concatenate(
        [W_eff.reshape(E * P, S), b_eff.reshape(E * P, 1)], axis=1)  # [E*P, S+1]

    # Block-diagonal gate weight: row (e,p) x col (k,p') = Wg[e,k] * delta(p,p').
    eyeP = jnp.eye(P, dtype=jnp.float32)
    wg_bd = (Wg[:, None, :, None] * eyeP[None, :, None, :]).reshape(E * P, GF * P)
    bg2 = jnp.repeat(bg.reshape(E, 1), P, axis=0)                   # [E*P, 1]

    # Per-row sinusoid scale / phase tables for the gate-input rows.
    freqs = jnp.arange(1, NUM_FREQ + 1, dtype=jnp.float32)
    scale_k = jnp.concatenate([jnp.zeros((F,), jnp.float32), freqs, freqs]) \
        * (math.pi / MAX_TIME)                                      # [GF]
    phase_k = jnp.concatenate([jnp.zeros((F + NUM_FREQ,), jnp.float32),
                               jnp.full((NUM_FREQ,), 0.5 * math.pi, jnp.float32)])
    sc = jnp.repeat(scale_k, P).reshape(GF * P, 1)
    ph = jnp.repeat(phase_k, P).reshape(GF * P, 1)

    return dict(weff_aug=weff_aug, wg_bd=wg_bd, bg2=bg2,
                stage_scale=sc, stage_phase=ph, E=E, F=F)


def moe_layer(x, x_mark_enc, folded, *, pred_len, top_k):
    B, S, F = x.shape
    P = pred_len
    E = int(folded["E"])
    GF = F + 2 * NUM_FREQ

    # ---- per-forward layout plumbing (wrapper-side, XLA) ----
    x_sbf = jnp.transpose(x, (1, 0, 2)).reshape(S, B * F)               # [S, B*F]
    x_aug = jnp.concatenate(
        [x_sbf, jnp.ones((1, B * F), x_sbf.dtype)], axis=0)             # [S+1, B*F]

    xg = x[:, S - P:, :]                                                # [B, P, F]
    xg_kpb = jnp.transpose(xg, (2, 1, 0))                               # [F, P, B]
    xg_rows = jnp.broadcast_to(xg_kpb[:, :, :, None],
                               (F, P, B, F)).reshape(F * P, B * F)
    hh = x_mark_enc[:, S - P:, -1]                                      # [B, P]  (hour col)
    hh_pb = jnp.transpose(hh, (1, 0))                                   # [P, B]
    hh_rows = jnp.broadcast_to(hh_pb[None, :, :, None],
                               (2 * NUM_FREQ, P, B, F)
                               ).reshape(2 * NUM_FREQ * P, B * F)
    gin = jnp.concatenate([xg_rows, hh_rows], axis=0)                   # [GF*P, B*F]

    kernel = make_moe_kernel(B, S, P, F, E, top_k)

    def full_spec(arr):
        nd = arr.ndim
        return pl.BlockSpec(arr.shape, lambda i, nd=nd: (0,) * nd)

    args = (gin, folded["stage_scale"], folded["stage_phase"], x_aug,
            folded["weff_aug"], folded["wg_bd"], folded["bg2"])
    o, kl = pl.pallas_call(
        kernel,
        out_shape=(jax.ShapeDtypeStruct((P, B * F), jnp.float32),
                   jax.ShapeDtypeStruct((1, 1), jnp.float32)),
        grid=(1,),
        in_specs=[full_spec(a) for a in args],
        out_specs=(pl.BlockSpec((P, B * F), lambda i: (0, 0)),
                   pl.BlockSpec(memory_space=pltpu.MemorySpace.SMEM)),
        compiler_params=pltpu.CompilerParams(dimension_semantics=("arbitrary",)),
    )(*args)

    out = jnp.transpose(o.reshape(P, B, F), (1, 0, 2))                  # [B, P, F]
    return out, kl[0, 0]


def reference(x, mark, params, *, pred_len, top_k):
    """Pure-JAX reference mirroring the PyTorch forward."""
    B, S, F = x.shape
    Wl, bl, Ws, bs = params["Wl"], params["bl"], params["Ws"], params["bs"]
    Wg, bg = params["Wg"], params["bg"]
    Mavg = params["Mavg"]
    E, n_scales = Wl.shape[0], Wl.shape[1]

    hh = mark[:, :, -1]
    freqs = jnp.arange(1, NUM_FREQ + 1, dtype=jnp.float32)
    ang = (hh / MAX_TIME)[..., None] * freqs * jnp.pi
    stage = jnp.concatenate([jnp.sin(ang), jnp.cos(ang)], -1)
    xc = jnp.concatenate([x, stage], -1)
    logits = xc @ Wg.T + bg.reshape(-1)
    gs = jax.nn.softmax(logits, -1)[:, -pred_len:, :]
    u = 1.0 / E
    kl = KL_LAMBDA * jnp.sum(u * (jnp.log(u) - jnp.log(gs))) / B
    tv, ti = lax.top_k(gs, top_k)
    mask = jnp.sum(jax.nn.one_hot(ti, E, dtype=gs.dtype) * tv[..., None], axis=-2)
    gate = mask / jnp.sum(mask, -1, keepdims=True)

    avgs = [jnp.einsum("ts,bsf->btf", Mavg[s], x) for s in range(n_scales)]
    short = x - sum(avgs)
    out = jnp.zeros((B, pred_len, F), jnp.float32)
    for e in range(E):
        oe = jnp.einsum("pt,btf->bpf", Ws[e], short) + bs[e].reshape(1, pred_len, 1)
        for s in range(n_scales):
            oe = oe + jnp.einsum("pt,btf->bpf", Wl[e, s], avgs[s]) + bl[e, s].reshape(1, pred_len, 1)
        out = out + oe * gate[:, :, e][..., None]
    return out, kl


if __name__ == "__main__":
    B, S, P, F, E, top_k, Mmark = 2, 16, 8, 4, 4, 2, 3
    n_scales = len(MOVING_AVG_SCALES)

    key = jax.random.PRNGKey(0)
    ks = jax.random.split(key, 8)
    Wl = 0.1 * jax.random.normal(ks[0], (E, n_scales, P, S), jnp.float32)
    bl = 0.1 * jax.random.normal(ks[1], (E, n_scales, P, 1), jnp.float32)
    Ws = 0.1 * jax.random.normal(ks[2], (E, P, S), jnp.float32)
    bs = 0.1 * jax.random.normal(ks[3], (E, P, 1), jnp.float32)
    Wg = 0.1 * jax.random.normal(ks[4], (E, F + 2 * NUM_FREQ), jnp.float32)
    bg = 0.1 * jax.random.normal(ks[5], (1, E), jnp.float32)

    Mavg = jnp.asarray(np.stack([build_avg_matrix(S, w) for w in MOVING_AVG_SCALES]))

    params = dict(Mavg=Mavg, Wl=Wl, bl=bl, Ws=Ws, bs=bs, Wg=Wg, bg=bg)

    x = jax.random.normal(ks[6], (B, S, F), jnp.float32)
    x_mark_enc = jax.random.uniform(ks[7], (B, S, Mmark), jnp.float32) * MAX_TIME

    # Data-independent folding: computed once, cached outside the hot path.
    folded = jax.tree_util.tree_map(jax.block_until_ready,
                                    fold_params(params, S, P))

    out, kl = moe_layer(x, x_mark_enc, folded, pred_len=P, top_k=top_k)
    out = jax.block_until_ready(out)
    kl = jax.block_until_ready(kl)

    ref_out, ref_kl = reference(x, x_mark_enc, params, pred_len=P, top_k=top_k)
    np.testing.assert_allclose(np.asarray(out), np.asarray(ref_out), rtol=1e-4, atol=1e-4)
    np.testing.assert_allclose(float(kl), float(ref_kl), rtol=1e-4, atol=1e-6)

    print("KERNEL_OK")
</pallas_src>

<mosaic_0001>
module attributes {stable_mosaic.version = 11 : i64} {
  func.func @kernel(%arg0: i32, %arg1: memref<96x8xf32, #tpu.memory_space<vmem>>, %arg2: memref<96x1xf32, #tpu.memory_space<vmem>>, %arg3: memref<96x1xf32, #tpu.memory_space<vmem>>, %arg4: memref<17x8xf32, #tpu.memory_space<vmem>>, %arg5: memref<32x17xf32, #tpu.memory_space<vmem>>, %arg6: memref<32x96xf32, #tpu.memory_space<vmem>>, %arg7: memref<32x1xf32, #tpu.memory_space<vmem>>, %arg8: memref<8x8xf32, #tpu.memory_space<vmem>>, %arg9: memref<1x1xf32, #tpu.memory_space<smem>>) attributes {dimension_semantics = [#tpu.dimension_semantics<arbitrary>], iteration_bounds = array<i64: 1>, scalar_prefetch = 0 : i64, scratch_operands = 0 : i64, tpu.core_type = #tpu.core_type<tc>, window_params = [{pipeline_mode = #tpu.pipeline_mode<synchronous>, transform_indices = @transform_0, window_bounds = array<i64: 96, 8>}, {pipeline_mode = #tpu.pipeline_mode<synchronous>, transform_indices = @transform_1, window_bounds = array<i64: 96, 1>}, {pipeline_mode = #tpu.pipeline_mode<synchronous>, transform_indices = @transform_2, window_bounds = array<i64: 96, 1>}, {pipeline_mode = #tpu.pipeline_mode<synchronous>, transform_indices = @transform_3, window_bounds = array<i64: 17, 8>}, {pipeline_mode = #tpu.pipeline_mode<synchronous>, transform_indices = @transform_4, window_bounds = array<i64: 32, 17>}, {pipeline_mode = #tpu.pipeline_mode<synchronous>, transform_indices = @transform_5, window_bounds = array<i64: 32, 96>}, {pipeline_mode = #tpu.pipeline_mode<synchronous>, transform_indices = @transform_6, window_bounds = array<i64: 32, 1>}, {pipeline_mode = #tpu.pipeline_mode<synchronous>, transform_indices = @transform_7, window_bounds = array<i64: 8, 8>}, {transform_indices = @transform_8, window_bounds = array<i64: 1, 1>}]} {
    %c0 = arith.constant 0 : index
    %c0_0 = arith.constant 0 : index
    %0 = vector.load %arg1[%c0, %c0_0] : memref<96x8xf32, #tpu.memory_space<vmem>>, vector<96x8xf32>
    %1 = tpu.iota {dimensions = array<i32: 0>} : vector<96x8xi32>
    %c32_i32 = arith.constant 32 : i32
    %2 = vector.broadcast %c32_i32 : i32 to vector<96x8xi32>
    %3 = arith.cmpi slt, %1, %2 : vector<96x8xi32>
    %c0_1 = arith.constant 0 : index
    %c0_2 = arith.constant 0 : index
    %4 = vector.load %arg2[%c0_1, %c0_2] : memref<96x1xf32, #tpu.memory_space<vmem>>, vector<96x1xf32>
    %5 = vector.broadcast %4 : vector<96x1xf32> to vector<96x8xf32>
    %6 = arith.mulf %0, %5 : vector<96x8xf32>
    %c0_3 = arith.constant 0 : index
    %c0_4 = arith.constant 0 : index
    %7 = vector.load %arg3[%c0_3, %c0_4] : memref<96x1xf32, #tpu.memory_space<vmem>>, vector<96x1xf32>
    %8 = vector.broadcast %7 : vector<96x1xf32> to vector<96x8xf32>
    %9 = arith.addf %6, %8 : vector<96x8xf32>
    %10 = math.sin %9 : vector<96x8xf32>
    %11 = arith.select %3, %0, %10 : vector<96x8xi1>, vector<96x8xf32>
    %c0_5 = arith.constant 0 : index
    %c0_6 = arith.constant 0 : index
    %12 = vector.load %arg6[%c0_5, %c0_6] : memref<32x96xf32, #tpu.memory_space<vmem>>, vector<32x96xf32>
    %cst = arith.constant dense<0.000000e+00> : vector<32x8xf32>
    %13 = tpu.matmul %12, %11, %cst {dimension_numbers = #tpu.dot_dimension_numbers<[1], [0], [0], [1], [0, 0, 1, 1], [], []>} : vector<32x96xf32>, vector<96x8xf32>, vector<32x8xf32> -> vector<32x8xf32>
    %c0_7 = arith.constant 0 : index
    %c0_8 = arith.constant 0 : index
    %14 = vector.load %arg7[%c0_7, %c0_8] : memref<32x1xf32, #tpu.memory_space<vmem>>, vector<32x1xf32>
    %15 = vector.broadcast %14 : vector<32x1xf32> to vector<32x8xf32>
    %16 = arith.addf %13, %15 : vector<32x8xf32>
    %17 = vector.shape_cast %16 : vector<32x8xf32> to vector<4x8x8xf32>
    %cst_9 = arith.constant dense<0xFF800000> : vector<8x8xf32>
    %18 = vector.multi_reduction <maximumf>, %17, %cst_9 [0] : vector<4x8x8xf32> to vector<8x8xf32>
    %19 = vector.shape_cast %18 : vector<8x8xf32> to vector<1x8x8xf32>
    %20 = vector.broadcast %19 : vector<1x8x8xf32> to vector<4x8x8xf32>
    %21 = arith.subf %17, %20 : vector<4x8x8xf32>
    %22 = math.exp %21 : vector<4x8x8xf32>
    %cst_10 = arith.constant dense<0.000000e+00> : vector<8x8xf32>
    %23 = vector.multi_reduction <add>, %22, %cst_10 [0] : vector<4x8x8xf32> to vector<8x8xf32>
    %24 = vector.shape_cast %23 : vector<8x8xf32> to vector<1x8x8xf32>
    %25 = vector.broadcast %24 : vector<1x8x8xf32> to vector<4x8x8xf32>
    %26 = arith.divf %22, %25 : vector<4x8x8xf32>
    %27 = math.log %24 : vector<1x8x8xf32>
    %28 = vector.broadcast %27 : vector<1x8x8xf32> to vector<4x8x8xf32>
    %29 = arith.subf %21, %28 : vector<4x8x8xf32>
    %cst_11 = arith.constant -1.38629436 : f32
    %30 = vector.broadcast %cst_11 : f32 to vector<4x8x8xf32>
    %31 = arith.subf %30, %29 : vector<4x8x8xf32>
    %cst_12 = arith.constant 2.500000e-01 : f32
    %32 = vector.broadcast %cst_12 : f32 to vector<4x8x8xf32>
    %33 = arith.mulf %32, %31 : vector<4x8x8xf32>
    %34 = vector.shape_cast %33 : vector<4x8x8xf32> to vector<1x4x8x8xf32>
    %cst_13 = arith.constant dense<0.000000e+00> : vector<1xf32>
    %35 = vector.multi_reduction <add>, %34, %cst_13 [1, 2, 3] : vector<1x4x8x8xf32> to vector<1xf32>
    %36 = vector.shape_cast %35 : vector<1xf32> to vector<1x1x1x1xf32>
    %37 = vector.extract %36[0, 0, 0, 0] : f32 from vector<1x1x1x1xf32>
    %cst_14 = arith.constant 1.250000e-04 : f32
    %38 = arith.mulf %cst_14, %37 : f32
    %c0_15 = arith.constant 0 : index
    %c0_16 = arith.constant 0 : index
    %39 = memref.load %arg9[%c0_15, %c0_16] : memref<1x1xf32, #tpu.memory_space<smem>>
    memref.store %38, %arg9[%c0_15, %c0_16] : memref<1x1xf32, #tpu.memory_space<smem>>
    %40 = tpu.iota {dimensions = array<i32: 0>} : vector<4x8x8xi32>
    %cst_17 = arith.constant 0.000000e+00 : f32
    %41 = vector.broadcast %cst_17 : f32 to vector<4x8x8xf32>
    %cst_18 = arith.constant dense<0xFF800000> : vector<8x8xf32>
    %42 = vector.multi_reduction <maximumf>, %26, %cst_18 [0] : vector<4x8x8xf32> to vector<8x8xf32>
    %43 = vector.shape_cast %42 : vector<8x8xf32> to vector<1x8x8xf32>
    %44 = vector.broadcast %43 : vector<1x8x8xf32> to vector<4x8x8xf32>
    %45 = arith.cmpf oeq, %26, %44 : vector<4x8x8xf32>
    %c4_i32 = arith.constant 4 : i32
    %46 = vector.broadcast %c4_i32 : i32 to vector<4x8x8xi32>
    %47 = arith.select %45, %40, %46 : vector<4x8x8xi1>, vector<4x8x8xi32>
    %cst_19 = arith.constant dense<2147483647> : vector<8x8xi32>
    %48 = vector.multi_reduction <minsi>, %47, %cst_19 [0] : vector<4x8x8xi32> to vector<8x8xi32>
    %49 = vector.shape_cast %48 : vector<8x8xi32> to vector<1x8x8xi32>
    %50 = vector.broadcast %49 : vector<1x8x8xi32> to vector<4x8x8xi32>
    %51 = arith.cmpi eq, %40, %50 : vector<4x8x8xi32>
    %cst_20 = arith.constant 0.000000e+00 : f32
    %52 = vector.broadcast %cst_20 : f32 to vector<4x8x8xf32>
    %53 = arith.select %51, %26, %52 : vector<4x8x8xi1>, vector<4x8x8xf32>
    %54 = arith.addf %41, %53 : vector<4x8x8xf32>
    %cst_21 = arith.constant 0xFF800000 : f32
    %55 = vector.broadcast %cst_21 : f32 to vector<4x8x8xf32>
    %56 = arith.select %51, %55, %26 : vector<4x8x8xi1>, vector<4x8x8xf32>
    %cst_22 = arith.constant dense<0xFF800000> : vector<8x8xf32>
    %57 = vector.multi_reduction <maximumf>, %56, %cst_22 [0] : vector<4x8x8xf32> to vector<8x8xf32>
    %58 = vector.shape_cast %57 : vector<8x8xf32> to vector<1x8x8xf32>
    %59 = vector.broadcast %58 : vector<1x8x8xf32> to vector<4x8x8xf32>
    %60 = arith.cmpf oeq, %56, %59 : vector<4x8x8xf32>
    %c4_i32_23 = arith.constant 4 : i32
    %61 = vector.broadcast %c4_i32_23 : i32 to vector<4x8x8xi32>
    %62 = arith.select %60, %40, %61 : vector<4x8x8xi1>, vector<4x8x8xi32>
    %cst_24 = arith.constant dense<2147483647> : vector<8x8xi32>
    %63 = vector.multi_reduction <minsi>, %62, %cst_24 [0] : vector<4x8x8xi32> to vector<8x8xi32>
    %64 = vector.shape_cast %63 : vector<8x8xi32> to vector<1x8x8xi32>
    %65 = vector.broadcast %64 : vector<1x8x8xi32> to vector<4x8x8xi32>
    %66 = arith.cmpi eq, %40, %65 : vector<4x8x8xi32>
    %cst_25 = arith.constant 0.000000e+00 : f32
    %67 = vector.broadcast %cst_25 : f32 to vector<4x8x8xf32>
    %68 = arith.select %66, %26, %67 : vector<4x8x8xi1>, vector<4x8x8xf32>
    %69 = arith.addf %54, %68 : vector<4x8x8xf32>
    %cst_26 = arith.constant dense<0.000000e+00> : vector<8x8xf32>
    %70 = vector.multi_reduction <add>, %69, %cst_26 [0] : vector<4x8x8xf32> to vector<8x8xf32>
    %71 = vector.shape_cast %70 : vector<8x8xf32> to vector<1x8x8xf32>
    %72 = vector.broadcast %71 : vector<1x8x8xf32> to vector<4x8x8xf32>
    %73 = arith.divf %69, %72 : vector<4x8x8xf32>
    %c0_27 = arith.constant 0 : index
    %c0_28 = arith.constant 0 : index
    %74 = vector.load %arg5[%c0_27, %c0_28] : memref<32x17xf32, #tpu.memory_space<vmem>>, vector<32x17xf32>
    %c0_29 = arith.constant 0 : index
    %c0_30 = arith.constant 0 : index
    %75 = vector.load %arg4[%c0_29, %c0_30] : memref<17x8xf32, #tpu.memory_space<vmem>>, vector<17x8xf32>
    %cst_31 = arith.constant dense<0.000000e+00> : vector<32x8xf32>
    %76 = tpu.matmul %74, %75, %cst_31 {dimension_numbers = #tpu.dot_dimension_numbers<[1], [0], [0], [1], [0, 0, 1, 1], [], []>} : vector<32x17xf32>, vector<17x8xf32>, vector<32x8xf32> -> vector<32x8xf32>
    %77 = vector.shape_cast %76 : vector<32x8xf32> to vector<4x8x8xf32>
    %78 = arith.mulf %73, %77 : vector<4x8x8xf32>
    %cst_32 = arith.constant dense<0.000000e+00> : vector<8x8xf32>
    %79 = vector.multi_reduction <add>, %78, %cst_32 [0] : vector<4x8x8xf32> to vector<8x8xf32>
    %c0_33 = arith.constant 0 : index
    %c0_34 = arith.constant 0 : index
    %80 = vector.load %arg8[%c0_33, %c0_34] : memref<8x8xf32, #tpu.memory_space<vmem>>, vector<8x8xf32>
    tpu.vector_store %arg8[%c0_33, %c0_34], %79 {strides = array<i32>} : memref<8x8xf32, #tpu.memory_space<vmem>>, vector<8x8xf32>,
    return
  }
  func.func @transform_0(%arg0: i32) -> (i32, i32) {
    %c0_i32 = arith.constant 0 : i32
    %c0_i32_0 = arith.constant 0 : i32
    %c0_i32_1 = arith.constant 0 : i32
    return %c0_i32, %c0_i32_0 : i32, i32
  }
  func.func @transform_1(%arg0: i32) -> (i32, i32) {
    %c0_i32 = arith.constant 0 : i32
    %c0_i32_0 = arith.constant 0 : i32
    %c0_i32_1 = arith.constant 0 : i32
    return %c0_i32, %c0_i32_0 : i32, i32
  }
  func.func @transform_2(%arg0: i32) -> (i32, i32) {
    %c0_i32 = arith.constant 0 : i32
    %c0_i32_0 = arith.constant 0 : i32
    %c0_i32_1 = arith.constant 0 : i32
    return %c0_i32, %c0_i32_0 : i32, i32
  }
  func.func @transform_3(%arg0: i32) -> (i32, i32) {
    %c0_i32 = arith.constant 0 : i32
    %c0_i32_0 = arith.constant 0 : i32
    %c0_i32_1 = arith.constant 0 : i32
    return %c0_i32, %c0_i32_0 : i32, i32
  }
  func.func @transform_4(%arg0: i32) -> (i32, i32) {
    %c0_i32 = arith.constant 0 : i32
    %c0_i32_0 = arith.constant 0 : i32
    %c0_i32_1 = arith.constant 0 : i32
    return %c0_i32, %c0_i32_0 : i32, i32
  }
  func.func @transform_5(%arg0: i32) -> (i32, i32) {
    %c0_i32 = arith.constant 0 : i32
    %c0_i32_0 = arith.constant 0 : i32
    %c0_i32_1 = arith.constant 0 : i32
    return %c0_i32, %c0_i32_0 : i32, i32
  }
  func.func @transform_6(%arg0: i32) -> (i32, i32) {
    %c0_i32 = arith.constant 0 : i32
    %c0_i32_0 = arith.constant 0 : i32
    %c0_i32_1 = arith.constant 0 : i32
    return %c0_i32, %c0_i32_0 : i32, i32
  }
  func.func @transform_7(%arg0: i32) -> (i32, i32) {
    %c0_i32 = arith.constant 0 : i32
    %c0_i32_0 = arith.constant 0 : i32
    %c0_i32_1 = arith.constant 0 : i32
    return %c0_i32, %c0_i32_0 : i32, i32
  }
  func.func @transform_8(%arg0: i32) -> (i32, i32) {
    %c0_i32 = arith.constant 0 : i32
    %c0_i32_0 = arith.constant 0 : i32
    %c0_i32_1 = arith.constant 0 : i32
    return %c0_i32, %c0_i32_0 : i32, i32
  }
}

</mosaic_0001>

<llo_original>
// kernel: tpu_custom_call.1
$region0: #{tpu_custom_call.1}
  #allocation0 [shape = 'u32[]', space=smem, size = 0x4, offset = 0x4, fixed_abs, tag = 'smem constant byte address 0x4 - core index']
  #allocation1 [shape = 'u32[144,128]{1,0:T(1,128)}', space=vmem, size = 0x12000, scoped, tag = 'internal scratch']
  %s0 = inlined_call_operand.vmem [shape: f32[96,8], index: 0, kind: input, shape index: {}]
  %s1 = inlined_call_operand.vmem [shape: f32[96,1], index: 1, kind: input, shape index: {}]
  %s2 = inlined_call_operand.vmem [shape: f32[96,1], index: 2, kind: input, shape index: {}]
  %s3 = inlined_call_operand.vmem [shape: f32[17,8], index: 3, kind: input, shape index: {}]
  %s4 = inlined_call_operand.vmem [shape: f32[32,17], index: 4, kind: input, shape index: {}]
  %s5 = inlined_call_operand.vmem [shape: f32[32,96], index: 5, kind: input, shape index: {}]
  %s6 = inlined_call_operand.vmem [shape: f32[32,1], index: 6, kind: input, shape index: {}]
  %s7 = inlined_call_operand.hbm [shape: f32[8,8], index: 7, kind: output, shape index: {0}]
  %s8 = inlined_call_operand.hbm [shape: f32[1,1], index: 8, kind: output, shape index: {1}]
  %9 = xla_tuple %s7, %s8
  %s10 = sld [smem:[#allocation0]]
  $region46: #{tpu_custom_call.1} parent=0
    _
  %s12 = ssub.s32 1, %s10
  %s13 = scalar_select 0, %s12, %s10
  $region1: #{tpu_custom_call.1} parent=0
    #allocation2 [shape = 'u8[4096]{0}', space=vmem, size = 0x1000, scoped, tag = 'output window, operand 0, single buffered']
    #allocation3 [shape = 's32[1]{0}', space=sflag, size = 0x4, scoped, tag = 'scoped memory for tpu_custom_call.1']
    #allocation4 [shape = 's32[1]{0}', space=sflag, size = 0x4, scoped, tag = 'scoped memory for tpu_custom_call.1']
    #allocation5 [shape = 'u8[512]{0}', space=smem, size = 0x200, scoped, tag = 'output window, operand 1, single buffered']
    %14 = vsyncpa [#allocation3], 0
    %15 = vsyncpa [#allocation4], 0
    // Predicated region
    $region2: #{tpu_custom_call.1} parent=1 // pred_check
      _
    $region3: #{tpu_custom_call.1} parent=1 // pred_check_branch
      %17 = sbr.rel (0) target = $region5
    $region4: #{tpu_custom_call.1} parent=1 // pred_region
      _
    $region5: #{tpu_custom_call.1} parent=1 // pred_fallthru
      _
    // Predicated region
    $region6: #{tpu_custom_call.1} parent=1 // pred_check
      _
    $region7: #{tpu_custom_call.1} parent=1 // pred_check_branch
      %19 = sbr.rel (0) target = $region9
    $region8: #{tpu_custom_call.1} parent=1 // pred_region
      _
    $region9: #{tpu_custom_call.1} parent=1 // pred_fallthru
      _
    // Predicated region
    $region10: #{tpu_custom_call.1} parent=1 // pred_check
      _
    $region11: #{tpu_custom_call.1} parent=1 // pred_check_branch
      %21 = sbr.rel (0) target = $region13
    $region12: #{tpu_custom_call.1} parent=1 // pred_region
      _
    $region13: #{tpu_custom_call.1} parent=1 // pred_fallthru
      _
    // Predicated region
    $region14: #{tpu_custom_call.1} parent=1 // pred_check
      _
    $region15: #{tpu_custom_call.1} parent=1 // pred_check_branch
      %23 = sbr.rel (0) target = $region17
    $region16: #{tpu_custom_call.1} parent=1 // pred_region
      _
    $region17: #{tpu_custom_call.1} parent=1 // pred_fallthru
      _
    // Predicated region
    $region18: #{tpu_custom_call.1} parent=1 // pred_check
      _
    $region19: #{tpu_custom_call.1} parent=1 // pred_check_branch
      %25 = sbr.rel (0) target = $region21
    $region20: #{tpu_custom_call.1} parent=1 // pred_region
      _
    $region21: #{tpu_custom_call.1} parent=1 // pred_fallthru
      _
    // Predicated region
    $region22: #{tpu_custom_call.1} parent=1 // pred_check
      _
    $region23: #{tpu_custom_call.1} parent=1 // pred_check_branch
      %27 = sbr.rel (0) target = $region25
    $region24: #{tpu_custom_call.1} parent=1 // pred_region
      _
    $region25: #{tpu_custom_call.1} parent=1 // pred_fallthru
      _
    // Predicated region
    $region26: #{tpu_custom_call.1} parent=1 // pred_check
      _
    $region27: #{tpu_custom_call.1} parent=1 // pred_check_branch
      %29 = sbr.rel (0) target = $region29
    $region28: #{tpu_custom_call.1} parent=1 // pred_region
      _
    $region29: #{tpu_custom_call.1} parent=1 // pred_fallthru
      _
    %v30 = vld [vmem:[%s0] sm:$0xff]
    %v31 = vld [vmem:[%s0 + $0x8] sm:$0xff]
    %v32 = vld [vmem:[%s0 + $0x10] sm:$0xff]
    %v33 = vld [vmem:[%s0 + $0x18] sm:$0xff]
    %v34 = vld [vmem:[%s0 + $0x20] sm:$0xff]
    %v35 = vld [vmem:[%s0 + $0x28] sm:$0xff]
    %v36 = vld [vmem:[%s0 + $0x30] sm:$0xff]
    %v37 = vld [vmem:[%s0 + $0x38] sm:$0xff]
    %v38 = vld [vmem:[%s0 + $0x40] sm:$0xff]
    %v39 = vld [vmem:[%s0 + $0x48] sm:$0xff]
    %v40 = vld [vmem:[%s0 + $0x50] sm:$0xff]
    %v41 = vld [vmem:[%s0 + $0x58] sm:$0xff]
    %v42 = vlaneseq
    %v43 = vshrl.u32 %v42, 7
    %v44 = vadd.s32 %v43, 8
    %v45 = vadd.s32 %v43, 16
    %v46 = vadd.s32 %v43, 24
    %v47 = vadd.s32 %v43, 32
    %v48 = vadd.s32 %v43, 40
    %v49 = vadd.s32 %v43, 48
    %v50 = vadd.s32 %v43, 56
    %v51 = vadd.s32 %v43, 64
    %v52 = vadd.s32 %v43, 72
    %v53 = vadd.s32 %v43, 80
    %v54 = vadd.s32 %v43, 88
    %vm55 = vcmp.lt.s32.totalorder %v43, 32
    %vm56 = vcmp.lt.s32.totalorder %v44, 32
    %vm57 = vcmp.lt.s32.totalorder %v45, 32
    %vm58 = vcmp.lt.s32.totalorder %v46, 32
    %vm59 = vcmp.lt.s32.totalorder %v47, 32
    %vm60 = vcmp.lt.s32.totalorder %v48, 32
    %vm61 = vcmp.lt.s32.totalorder %v49, 32
    %vm62 = vcmp.lt.s32.totalorder %v50, 32
    %vm63 = vcmp.lt.s32.totalorder %v51, 32
    %vm64 = vcmp.lt.s32.totalorder %v52, 32
    %vm65 = vcmp.lt.s32.totalorder %v53, 32
    %vm66 = vcmp.lt.s32.totalorder %v54, 32
    %v67 = vld [vmem:[%s1] sm:$0xff]
    %v68 = vld [vmem:[%s1 + $0x8] sm:$0xff]
    %v69 = vld [vmem:[%s1 + $0x10] sm:$0xff]
    %v70 = vld [vmem:[%s1 + $0x18] sm:$0xff]
    %v71 = vld [vmem:[%s1 + $0x20] sm:$0xff]
    %v72 = vld [vmem:[%s1 + $0x28] sm:$0xff]
    %v73 = vld [vmem:[%s1 + $0x30] sm:$0xff]
    %v74 = vld [vmem:[%s1 + $0x38] sm:$0xff]
    %v75 = vld [vmem:[%s1 + $0x40] sm:$0xff]
    %v76 = vld [vmem:[%s1 + $0x48] sm:$0xff]
    %v77 = vld [vmem:[%s1 + $0x50] sm:$0xff]
    %v78 = vld [vmem:[%s1 + $0x58] sm:$0xff]
    %80 = vset.pattern.permute.xlu0 0
    %81 = vperm.xlu0 %80, %v67
    %v82 = vpop.permute.xlu0 %81
    %85 = vset.pattern.permute.xlu0 0
    %86 = vperm.xlu0 %85, %v68
    %v87 = vpop.permute.xlu0 %86
    %90 = vset.pattern.permute.xlu0 0
    %91 = vperm.xlu0 %90, %v69
    %v92 = vpop.permute.xlu0 %91
    %95 = vset.pattern.permute.xlu0 0
    %96 = vperm.xlu0 %95, %v70
    %v97 = vpop.permute.xlu0 %96
    %100 = vset.pattern.permute.xlu0 0
    %101 = vperm.xlu0 %100, %v71
    %v102 = vpop.permute.xlu0 %101
    %105 = vset.pattern.permute.xlu0 0
    %106 = vperm.xlu0 %105, %v72
    %v107 = vpop.permute.xlu0 %106
    %110 = vset.pattern.permute.xlu0 0
    %111 = vperm.xlu0 %110, %v73
    %v112 = vpop.permute.xlu0 %111
    %115 = vset.pattern.permute.xlu0 0
    %116 = vperm.xlu0 %115, %v74
    %v117 = vpop.permute.xlu0 %116
    %120 = vset.pattern.permute.xlu0 0
    %121 = vperm.xlu0 %120, %v75
    %v122 = vpop.permute.xlu0 %121
    %125 = vset.pattern.permute.xlu0 0
    %126 = vperm.xlu0 %125, %v76
    %v127 = vpop.permute.xlu0 %126
    %130 = vset.pattern.permute.xlu0 0
    %131 = vperm.xlu0 %130, %v77
    %v132 = vpop.permute.xlu0 %131
    %135 = vset.pattern.permute.xlu0 0
    %136 = vperm.xlu0 %135, %v78
    %v137 = vpop.permute.xlu0 %136
    %v139 = vmul.f32 %v30, %v82
    %v140 = vmul.f32 %v31, %v87
    %v141 = vmul.f32 %v32, %v92
    %v142 = vmul.f32 %v33, %v97
    %v143 = vmul.f32 %v34, %v102
    %v144 = vmul.f32 %v35, %v107
    %v145 = vmul.f32 %v36, %v112
    %v146 = vmul.f32 %v37, %v117
    %v147 = vmul.f32 %v38, %v122
    %v148 = vmul.f32 %v39, %v127
    %v149 = vmul.f32 %v40, %v132
    %v150 = vmul.f32 %v41, %v137
    %v151 = vld [vmem:[%s2] sm:$0xff]
    %v152 = vld [vmem:[%s2 + $0x8] sm:$0xff]
    %v153 = vld [vmem:[%s2 + $0x10] sm:$0xff]
    %v154 = vld [vmem:[%s2 + $0x18] sm:$0xff]
    %v155 = vld [vmem:[%s2 + $0x20] sm:$0xff]
    %v156 = vld [vmem:[%s2 + $0x28] sm:$0xff]
    %v157 = vld [vmem:[%s2 + $0x30] sm:$0xff]
    %v158 = vld [vmem:[%s2 + $0x38] sm:$0xff]
    %v159 = vld [vmem:[%s2 + $0x40] sm:$0xff]
    %v160 = vld [vmem:[%s2 + $0x48] sm:$0xff]
    %v161 = vld [vmem:[%s2 + $0x50] sm:$0xff]
    %v162 = vld [vmem:[%s2 + $0x58] sm:$0xff]
    %164 = vset.pattern.permute.xlu0 0
    %165 = vperm.xlu0 %164, %v151
    %v166 = vpop.permute.xlu0 %165
    %169 = vset.pattern.permute.xlu0 0
    %170 = vperm.xlu0 %169, %v152
    %v171 = vpop.permute.xlu0 %170
    %174 = vset.pattern.permute.xlu0 0
    %175 = vperm.xlu0 %174, %v153
    %v176 = vpop.permute.xlu0 %175
    %179 = vset.pattern.permute.xlu0 0
    %180 = vperm.xlu0 %179, %v154
    %v181 = vpop.permute.xlu0 %180
    %184 = vset.pattern.permute.xlu0 0
    %185 = vperm.xlu0 %184, %v155
    %v186 = vpop.permute.xlu0 %185
    %189 = vset.pattern.permute.xlu0 0
    %190 = vperm.xlu0 %189, %v156
    %v191 = vpop.permute.xlu0 %190
    %194 = vset.pattern.permute.xlu0 0
    %195 = vperm.xlu0 %194, %v157
    %v196 = vpop.permute.xlu0 %195
    %199 = vset.pattern.permute.xlu0 0
    %200 = vperm.xlu0 %199, %v158
    %v201 = vpop.permute.xlu0 %200
    %204 = vset.pattern.permute.xlu0 0
    %205 = vperm.xlu0 %204, %v159
    %v206 = vpop.permute.xlu0 %205
    %209 = vset.pattern.permute.xlu0 0
    %210 = vperm.xlu0 %209, %v160
    %v211 = vpop.permute.xlu0 %210
    %214 = vset.pattern.permute.xlu0 0
    %215 = vperm.xlu0 %214, %v161
    %v216 = vpop.permute.xlu0 %215
    %219 = vset.pattern.permute.xlu0 0
    %220 = vperm.xlu0 %219, %v162
    %v221 = vpop.permute.xlu0 %220
    %v223 = vadd.f32 %v139, %v166
    %v224 = vadd.f32 %v140, %v171
    %v225 = vadd.f32 %v141, %v176
    %v226 = vadd.f32 %v142, %v181
    %v227 = vadd.f32 %v143, %v186
    %v228 = vadd.f32 %v144, %v191
    %v229 = vadd.f32 %v145, %v196
    %v230 = vadd.f32 %v146, %v201
    %v231 = vadd.f32 %v147, %v206
    %v232 = vadd.f32 %v148, %v211
    %v233 = vadd.f32 %v149, %v216
    %v234 = vadd.f32 %v150, %v221
    %v235 = vand.u32 2147483647, %v223
    %vm236 = vcmp.le.f32.partialorder %v235, 0.7853982
    %vm237 = vcmp.lt.s32.totalorder %v223, 0
    %v238 = vand.u32 %v223, 2139095040
    %v239 = vshrl.u32 %v238, 23
    %v240 = vsub.s32 %v239, 127
    %v241 = vand.u32 2147483647, %v223
    %v242 = vand.u32 %v241, 8388607
    %v243 = vor.u32 %v242, 8388608
    %v244 = vsub.s32 0, %v243
    %v245 = vadd.s32 %v240, 1
    %vm246 = vcmp.gt.s32.totalorder %v245, 0
    %v247 = vsel %vm246, %v245, 0
    %v248 = vshrl.u32 %v247, 5
    %v249 = vand.u32 %v247, 31
    %v250 = vsub.s32 32, %v249
    %v251 = vshrl.u32 683565275, %v250
    %v252 = vshll.u32 683565275, %v249
    %v253 = vshrl.u32 2475754826, %v250
    %v254 = vor.u32 %v252, %v253
    %v255 = vshll.u32 2475754826, %v249
    %v256 = vshrl.u32 2131351028, %v250
    %v257 = vor.u32 %v255, %v256
    %v258 = vshll.u32 2131351028, %v249
    %v259 = vshrl.u32 2102212464, %v250
    %v260 = vor.u32 %v258, %v259
    %v261 = vshll.u32 2102212464, %v249
    %v262 = vshrl.u32 920167782, %v250
    %v263 = vor.u32 %v261, %v262
    %v264 = vshll.u32 920167782, %v249
    %v265 = vshrl.u32 1326507024, %v250
    %v266 = vor.u32 %v264, %v265
    %vm267 = vcmp.lt.s32.totalorder %v248, 1
    %vm268 = vcmp.lt.s32.totalorder %v248, 2
    %vm269 = vcmp.lt.s32.totalorder %v248, 3
    %vm270 = vcmp.lt.s32.totalorder %v248, 4
    %v271 = vsel %vm267, %v251, %v254
    %v272 = vsel %vm270, %v260, 2102212464
    %v273 = vsel %vm269, %v257, %v272
    %v274 = vsel %vm268, %v271, %v273
    %v275 = vsel %vm267, %v254, %v257
    %v276 = vsel %vm270, %v263, 920167782
    %v277 = vsel %vm269, %v260, %v276
    %v278 = vsel %vm268, %v275, %v277
    %v279 = vsel %vm267, %v257, %v260
    %v280 = vsel %vm270, %v266, 1326507024
    %v281 = vsel %vm269, %v263, %v280
    %v282 = vsel %vm268, %v279, %v281
    %v283 = vshll.u32 %v243, 8
    %v284 = vmul.u32.u64.compose %v283, %v282
    %v285 = vextract.low.u32 %v284
    %v286 = vextract.high.u32 %v284
    %v287 = vmul.u32.u64.compose %v283, %v278
    %v288 = vextract.low.u32 %v287
    %v289 = vextract.high.u32 %v287
    %v290 = vmul.u32 %v283, %v274
    %v291 = vadd.s32 %v286, %v288
    %vm292 = vc.u32 %v286, %v288
    %v293 = vadd.s32 %v289, 1
    %v294 = vsel %vm292, %v293, %v289
    %v295 = vadd.s32 %v290, %v294
    %v296 = vadd.s32 %v295, 536870912
    %v297 = vshrl.u32 %v296, 30
    %v298 = vshll.u32 %v297, 30
    %v299 = vsub.s32 %v295, %v298
    %vm300 = vcmp.lt.s32.totalorder %v299, 0
    %v301 = vsub.s32 0, %v299
    %v302 = vsel %vm300, %v301, %v299
    %v303 = vclz %v302
    %v304 = vsub.s32 %v303, 2
    %vm305 = vcmp.gt.s32.totalorder 0, %v304
    %v306 = vsel %vm305, 0, %v304
    %v307 = vsub.s32 32, %v306
    %v308 = vshll.u32 %v299, %v306
    %v309 = vshrl.u32 %v291, %v307
    %v310 = vor.u32 %v308, %v309
    %v311 = vsub.s32 4294967266, %v306
    %v312 = vadd.s32 %v311, 127
    %v313 = vshll.u32 %v312, 23
    %v314 = vor.u32 4788187, %v313
    %v315 = vand.u32 2147483647, %v314
    %v317 = vcvt.s32.f32 %v310
    %v318 = vmul.f32 %v317, %v315
    %v319 = vxor.u32 %v318, 2147483648
    %v320 = vsel %vm237, %v319, %v318
    %v321 = vsub.s32 4, %v297
    %v322 = vsel %vm237, %v321, %v297
    %v323 = vsel %vm236, %v223, %v320
    %v324 = vsel %vm236, 0, %v322
    %v325 = vcosq.f32.pop %v323
    %v326 = vsinq.f32.pop %v323
    %vm327 = vweird.f32 %v223
    %v328 = vadd.s32 %v324, 3
    %v329 = vand.u32 %v328, 3
    %vm330 = vcmp.lt.s32.totalorder %v329, 2
    %vm331 = vcmp.eq.s32.totalorder %v329, 0
    %v332 = vxor.u32 %v326, 2147483648
    %v333 = vsel %vm331, %v325, %v332
    %vm334 = vcmp.eq.s32.totalorder %v329, 2
    %v335 = vxor.u32 %v325, 2147483648
    %v336 = vsel %vm334, %v335, %v326
    %v337 = vsel %vm330, %v333, %v336
    %v338 = vsel %vm327, nan, %v337
    %v339 = vand.u32 2147483647, %v224
    %vm340 = vcmp.le.f32.partialorder %v339, 0.7853982
    %vm341 = vcmp.lt.s32.totalorder %v224, 0
    %v342 = vand.u32 %v224, 2139095040
    %v343 = vshrl.u32 %v342, 23
    %v344 = vsub.s32 %v343, 127
    %v345 = vand.u32 2147483647, %v224
    %v346 = vand.u32 %v345, 8388607
    %v347 = vor.u32 %v346, 8388608
    %v348 = vsub.s32 0, %v347
    %v349 = vadd.s32 %v344, 1
    %vm350 = vcmp.gt.s32.totalorder %v349, 0
    %v351 = vsel %vm350, %v349, 0
    %v352 = vshrl.u32 %v351, 5
    %v353 = vand.u32 %v351, 31
    %v354 = vsub.s32 32, %v353
    %v355 = vshrl.u32 683565275, %v354
    %v356 = vshll.u32 683565275, %v353
    %v357 = vshrl.u32 2475754826, %v354
    %v358 = vor.u32 %v356, %v357
    %v359 = vshll.u32 2475754826, %v353
    %v360 = vshrl.u32 2131351028, %v354
    %v361 = vor.u32 %v359, %v360
    %v362 = vshll.u32 2131351028, %v353
    %v363 = vshrl.u32 2102212464, %v354
    %v364 = vor.u32 %v362, %v363
    %v365 = vshll.u32 2102212464, %v353
    %v366 = vshrl.u32 920167782, %v354
    %v367 = vor.u32 %v365, %v366
    %v368 = vshll.u32 920167782, %v353
    %v369 = vshrl.u32 1326507024, %v354
    %v370 = vor.u32 %v368, %v369
    %vm371 = vcmp.lt.s32.totalorder %v352, 1
    %vm372 = vcmp.lt.s32.totalorder %v352, 2
    %vm373 = vcmp.lt.s32.totalorder %v352, 3
    %vm374 = vcmp.lt.s32.totalorder %v352, 4
    %v375 = vsel %vm371, %v355, %v358
    %v376 = vsel %vm374, %v364, 2102212464
    %v377 = vsel %vm373, %v361, %v376
    %v378 = vsel %vm372, %v375, %v377
    %v379 = vsel %vm371, %v358, %v361
    %v380 = vsel %vm374, %v367, 920167782
    %v381 = vsel %vm373, %v364, %v380
    %v382 = vsel %vm372, %v379, %v381
    %v383 = vsel %vm371, %v361, %v364
    %v384 = vsel %vm374, %v370, 1326507024
    %v385 = vsel %vm373, %v367, %v384
    %v386 = vsel %vm372, %v383, %v385
    %v387 = vshll.u32 %v347, 8
    %v388 = vmul.u32.u64.compose %v387, %v386
    %v389 = vextract.low.u32 %v388
    %v390 = vextract.high.u32 %v388
    %v391 = vmul.u32.u64.compose %v387, %v382
    %v392 = vextract.low.u32 %v391
    %v393 = vextract.high.u32 %v391
    %v394 = vmul.u32 %v387, %v378
    %v395 = vadd.s32 %v390, %v392
    %vm396 = vc.u32 %v390, %v392
    %v397 = vadd.s32 %v393, 1
    %v398 = vsel %vm396, %v397, %v393
    %v399 = vadd.s32 %v394, %v398
    %v400 = vadd.s32 %v399, 536870912
    %v401 = vshrl.u32 %v400, 30
    %v402 = vshll.u32 %v401, 30
    %v403 = vsub.s32 %v399, %v402
    %vm404 = vcmp.lt.s32.totalorder %v403, 0
    %v405 = vsub.s32 0, %v403
    %v406 = vsel %vm404, %v405, %v403
    %v407 = vclz %v406
    %v408 = vsub.s32 %v407, 2
    %vm409 = vcmp.gt.s32.totalorder 0, %v408
    %v410 = vsel %vm409, 0, %v408
    %v411 = vsub.s32 32, %v410
    %v412 = vshll.u32 %v403, %v410
    %v413 = vshrl.u32 %v395, %v411
    %v414 = vor.u32 %v412, %v413
    %v415 = vsub.s32 4294967266, %v410
    %v416 = vadd.s32 %v415, 127
    %v417 = vshll.u32 %v416, 23
    %v418 = vor.u32 4788187, %v417
    %v419 = vand.u32 2147483647, %v418
    %v421 = vcvt.s32.f32 %v414
    %v422 = vmul.f32 %v421, %v419
    %v423 = vxor.u32 %v422, 2147483648
    %v424 = vsel %vm341, %v423, %v422
    %v425 = vsub.s32 4, %v401
    %v426 = vsel %vm341, %v425, %v401
    %v427 = vsel %vm340, %v224, %v424
    %v428 = vsel %vm340, 0, %v426
    %v429 = vcosq.f32.pop %v427
    %v430 = vsinq.f32.pop %v427
    %vm431 = vweird.f32 %v224
    %v432 = vadd.s32 %v428, 3
    %v433 = vand.u32 %v432, 3
    %vm434 = vcmp.lt.s32.totalorder %v433, 2
    %vm435 = vcmp.eq.s32.totalorder %v433, 0
    %v436 = vxor.u32 %v430, 2147483648
    %v437 = vsel %vm435, %v429, %v436
    %vm438 = vcmp.eq.s32.totalorder %v433, 2
    %v439 = vxor.u32 %v429, 2147483648
    %v440 = vsel %vm438, %v439, %v430
    %v441 = vsel %vm434, %v437, %v440
    %v442 = vsel %vm431, nan, %v441
    %v443 = vand.u32 2147483647, %v225
    %vm444 = vcmp.le.f32.partialorder %v443, 0.7853982
    %vm445 = vcmp.lt.s32.totalorder %v225, 0
    %v446 = vand.u32 %v225, 2139095040
    %v447 = vshrl.u32 %v446, 23
    %v448 = vsub.s32 %v447, 127
    %v449 = vand.u32 2147483647, %v225
    %v450 = vand.u32 %v449, 8388607
    %v451 = vor.u32 %v450, 8388608
    %v452 = vsub.s32 0, %v451
    %v453 = vadd.s32 %v448, 1
    %vm454 = vcmp.gt.s32.totalorder %v453, 0
    %v455 = vsel %vm454, %v453, 0
    %v456 = vshrl.u32 %v455, 5
    %v457 = vand.u32 %v455, 31
    %v458 = vsub.s32 32, %v457
    %v459 = vshrl.u32 683565275, %v458
    %v460 = vshll.u32 683565275, %v457
    %v461 = vshrl.u32 2475754826, %v458
    %v462 = vor.u32 %v460, %v461
    %v463 = vshll.u32 2475754826, %v457
    %v464 = vshrl.u32 2131351028, %v458
    %v465 = vor.u32 %v463, %v464
    %v466 = vshll.u32 2131351028, %v457
    %v467 = vshrl.u32 2102212464, %v458
    %v468 = vor.u32 %v466, %v467
    %v469 = vshll.u32 2102212464, %v457
    %v470 = vshrl.u32 920167782, %v458
    %v471 = vor.u32 %v469, %v470
    %v472 = vshll.u32 920167782, %v457
    %v473 = vshrl.u32 1326507024, %v458
    %v474 = vor.u32 %v472, %v473
    %vm475 = vcmp.lt.s32.totalorder %v456, 1
    %vm476 = vcmp.lt.s32.totalorder %v456, 2
    %vm477 = vcmp.lt.s32.totalorder %v456, 3
    %vm478 = vcmp.lt.s32.totalorder %v456, 4
    %v479 = vsel %vm475, %v459, %v462
    %v480 = vsel %vm478, %v468, 2102212464
    %v481 = vsel %vm477, %v465, %v480
    %v482 = vsel %vm476, %v479, %v481
    %v483 = vsel %vm475, %v462, %v465
    %v484 = vsel %vm478, %v471, 920167782
    %v485 = vsel %vm477, %v468, %v484
    %v486 = vsel %vm476, %v483, %v485
    %v487 = vsel %vm475, %v465, %v468
    %v488 = vsel %vm478, %v474, 1326507024
    %v489 = vsel %vm477, %v471, %v488
    %v490 = vsel %vm476, %v487, %v489
    %v491 = vshll.u32 %v451, 8
    %v492 = vmul.u32.u64.compose %v491, %v490
    %v493 = vextract.low.u32 %v492
    %v494 = vextract.high.u32 %v492
    %v495 = vmul.u32.u64.compose %v491, %v486
    %v496 = vextract.low.u32 %v495
    %v497 = vextract.high.u32 %v495
    %v498 = vmul.u32 %v491, %v482
    %v499 = vadd.s32 %v494, %v496
    %vm500 = vc.u32 %v494, %v496
    %v501 = vadd.s32 %v497, 1
    %v502 = vsel %vm500, %v501, %v497
    %v503 = vadd.s32 %v498, %v502
    %v504 = vadd.s32 %v503, 536870912
    %v505 = vshrl.u32 %v504, 30
    %v506 = vshll.u32 %v505, 30
    %v507 = vsub.s32 %v503, %v506
    %vm508 = vcmp.lt.s32.totalorder %v507, 0
    %v509 = vsub.s32 0, %v507
    %v510 = vsel %vm508, %v509, %v507
    %v511 = vclz %v510
    %v512 = vsub.s32 %v511, 2
    %vm513 = vcmp.gt.s32.totalorder 0, %v512
    %v514 = vsel %vm513, 0, %v512
    %v515 = vsub.s32 32, %v514
    %v516 = vshll.u32 %v507, %v514
    %v517 = vshrl.u32 %v499, %v515
    %v518 = vor.u32 %v516, %v517
    %v519 = vsub.s32 4294967266, %v514
    %v520 = vadd.s32 %v519, 127
    %v521 = vshll.u32 %v520, 23
    %v522 = vor.u32 4788187, %v521
    %v523 = vand.u32 2147483647, %v522
    %v525 = vcvt.s32.f32 %v518
    %v526 = vmul.f32 %v525, %v523
    %v527 = vxor.u32 %v526, 2147483648
    %v528 = vsel %vm445, %v527, %v526
    %v529 = vsub.s32 4, %v505
    %v530 = vsel %vm445, %v529, %v505
    %v531 = vsel %vm444, %v225, %v528
    %v532 = vsel %vm444, 0, %v530
    %v533 = vcosq.f32.pop %v531
    %v534 = vsinq.f32.pop %v531
    %vm535 = vweird.f32 %v225
    %v536 = vadd.s32 %v532, 3
    %v537 = vand.u32 %v536, 3
    %vm538 = vcmp.lt.s32.totalorder %v537, 2
    %vm539 = vcmp.eq.s32.totalorder %v537, 0
    %v540 = vxor.u32 %v534, 2147483648
    %v541 = vsel %vm539, %v533, %v540
    %vm542 = vcmp.eq.s32.totalorder %v537, 2
    %v543 = vxor.u32 %v533, 2147483648
    %v544 = vsel %vm542, %v543, %v534
    %v545 = vsel %vm538, %v541, %v544
    %v546 = vsel %vm535, nan, %v545
    %v547 = vand.u32 2147483647, %v226
    %vm548 = vcmp.le.f32.partialorder %v547, 0.7853982
    %vm549 = vcmp.lt.s32.totalorder %v226, 0
    %v550 = vand.u32 %v226, 2139095040
    %v551 = vshrl.u32 %v550, 23
    %v552 = vsub.s32 %v551, 127
    %v553 = vand.u32 2147483647, %v226
    %v554 = vand.u32 %v553, 8388607
    %v555 = vor.u32 %v554, 8388608
    %v556 = vsub.s32 0, %v555
    %v557 = vadd.s32 %v552, 1
    %vm558 = vcmp.gt.s32.totalorder %v557, 0
    %v559 = vsel %vm558, %v557, 0
    %v560 = vshrl.u32 %v559, 5
    %v561 = vand.u32 %v559, 31
    %v562 = vsub.s32 32, %v561
    %v563 = vshrl.u32 683565275, %v562
    %v564 = vshll.u32 683565275, %v561
    %v565 = vshrl.u32 2475754826, %v562
    %v566 = vor.u32 %v564, %v565
    %v567 = vshll.u32 2475754826, %v561
    %v568 = vshrl.u32 2131351028, %v562
    %v569 = vor.u32 %v567, %v568
    %v570 = vshll.u32 2131351028, %v561
    %v571 = vshrl.u32 2102212464, %v562
    %v572 = vor.u32 %v570, %v571
    %v573 = vshll.u32 2102212464, %v561
    %v574 = vshrl.u32 920167782, %v562
    %v575 = vor.u32 %v573, %v574
    %v576 = vshll.u32 920167782, %v561
    %v577 = vshrl.u32 1326507024, %v562
    %v578 = vor.u32 %v576, %v577
    %vm579 = vcmp.lt.s32.totalorder %v560, 1
    %vm580 = vcmp.lt.s32.totalorder %v560, 2
    %vm581 = vcmp.lt.s32.totalorder %v560, 3
    %vm582 = vcmp.lt.s32.totalorder %v560, 4
    %v583 = vsel %vm579, %v563, %v566
    %v584 = vsel %vm582, %v572, 2102212464
    %v585 = vsel %vm581, %v569, %v584
    %v586 = vsel %vm580, %v583, %v585
    %v587 = vsel %vm579, %v566, %v569
    %v588 = vsel %vm582, %v575, 920167782
    %v589 = vsel %vm581, %v572, %v588
    %v590 = vsel %vm580, %v587, %v589
    %v591 = vsel %vm579, %v569, %v572
    %v592 = vsel %vm582, %v578, 1326507024
    %v593 = vsel %vm581, %v575, %v592
    %v594 = vsel %vm580, %v591, %v593
    %v595 = vshll.u32 %v555, 8
    %v596 = vmul.u32.u64.compose %v595, %v594
    %v597 = vextract.low.u32 %v596
    %v598 = vextract.high.u32 %v596
    %v599 = vmul.u32.u64.compose %v595, %v590
    %v600 = vextract.low.u32 %v599
    %v601 = vextract.high.u32 %v599
    %v602 = vmul.u32 %v595, %v586
    %v603 = vadd.s32 %v598, %v600
    %vm604 = vc.u32 %v598, %v600
    %v605 = vadd.s32 %v601, 1
    %v606 = vsel %vm604, %v605, %v601
    %v607 = vadd.s32 %v602, %v606
    %v608 = vadd.s32 %v607, 536870912
    %v609 = vshrl.u32 %v608, 30
    %v610 = vshll.u32 %v609, 30
    %v611 = vsub.s32 %v607, %v610
    %vm612 = vcmp.lt.s32.totalorder %v611, 0
    %v613 = vsub.s32 0, %v611
    %v614 = vsel %vm612, %v613, %v611
    %v615 = vclz %v614
    %v616 = vsub.s32 %v615, 2
    %vm617 = vcmp.gt.s32.totalorder 0, %v616
    %v618 = vsel %vm617, 0, %v616
    %v619 = vsub.s32 32, %v618
    %v620 = vshll.u32 %v611, %v618
    %v621 = vshrl.u32 %v603, %v619
    %v622 = vor.u32 %v620, %v621
    %v623 = vsub.s32 4294967266, %v618
    %v624 = vadd.s32 %v623, 127
    %v625 = vshll.u32 %v624, 23
    %v626 = vor.u32 4788187, %v625
    %v627 = vand.u32 2147483647, %v626
    %v629 = vcvt.s32.f32 %v622
    %v630 = vmul.f32 %v629, %v627
    %v631 = vxor.u32 %v630, 2147483648
    %v632 = vsel %vm549, %v631, %v630
    %v633 = vsub.s32 4, %v609
    %v634 = vsel %vm549, %v633, %v609
    %v635 = vsel %vm548, %v226, %v632
    %v636 = vsel %vm548, 0, %v634
    %v637 = vcosq.f32.pop %v635
    %v638 = vsinq.f32.pop %v635
    %vm639 = vweird.f32 %v226
    %v640 = vadd.s32 %v636, 3
    %v641 = vand.u32 %v640, 3
    %vm642 = vcmp.lt.s32.totalorder %v641, 2
    %vm643 = vcmp.eq.s32.totalorder %v641, 0
    %v644 = vxor.u32 %v638, 2147483648
    %v645 = vsel %vm643, %v637, %v644
    %vm646 = vcmp.eq.s32.totalorder %v641, 2
    %v647 = vxor.u32 %v637, 2147483648
    %v648 = vsel %vm646, %v647, %v638
    %v649 = vsel %vm642, %v645, %v648
    %v650 = vsel %vm639, nan, %v649
    %v651 = vand.u32 2147483647, %v227
    %vm652 = vcmp.le.f32.partialorder %v651, 0.7853982
    %vm653 = vcmp.lt.s32.totalorder %v227, 0
    %v654 = vand.u32 %v227, 2139095040
    %v655 = vshrl.u32 %v654, 23
    %v656 = vsub.s32 %v655, 127
    %v657 = vand.u32 2147483647, %v227
    %v658 = vand.u32 %v657, 8388607
    %v659 = vor.u32 %v658, 8388608
    %v660 = vsub.s32 0, %v659
    %v661 = vadd.s32 %v656, 1
    %vm662 = vcmp.gt.s32.totalorder %v661, 0
    %v663 = vsel %vm662, %v661, 0
    %v664 = vshrl.u32 %v663, 5
    %v665 = vand.u32 %v663, 31
    %v666 = vsub.s32 32, %v665
    %v667 = vshrl.u32 683565275, %v666
    %v668 = vshll.u32 683565275, %v665
    %v669 = vshrl.u32 2475754826, %v666
    %v670 = vor.u32 %v668, %v669
    %v671 = vshll.u32 2475754826, %v665
    %v672 = vshrl.u32 2131351028, %v666
    %v673 = vor.u32 %v671, %v672
    %v674 = vshll.u32 2131351028, %v665
    %v675 = vshrl.u32 2102212464, %v666
    %v676 = vor.u32 %v674, %v675
    %v677 = vshll.u32 2102212464, %v665
    %v678 = vshrl.u32 920167782, %v666
    %v679 = vor.u32 %v677, %v678
    %v680 = vshll.u32 920167782, %v665
    %v681 = vshrl.u32 1326507024, %v666
    %v682 = vor.u32 %v680, %v681
    %vm683 = vcmp.lt.s32.totalorder %v664, 1
    %vm684 = vcmp.lt.s32.totalorder %v664, 2
    %vm685 = vcmp.lt.s32.totalorder %v664, 3
    %vm686 = vcmp.lt.s32.totalorder %v664, 4
    %v687 = vsel %vm683, %v667, %v670
    %v688 = vsel %vm686, %v676, 2102212464
    %v689 = vsel %vm685, %v673, %v688
    %v690 = vsel %vm684, %v687, %v689
    %v691 = vsel %vm683, %v670, %v673
    %v692 = vsel %vm686, %v679, 920167782
    %v693 = vsel %vm685, %v676, %v692
    %v694 = vsel %vm684, %v691, %v693
    %v695 = vsel %vm683, %v673, %v676
    %v696 = vsel %vm686, %v682, 1326507024
    %v697 = vsel %vm685, %v679, %v696
    %v698 = vsel %vm684, %v695, %v697
    %v699 = vshll.u32 %v659, 8
    %v700 = vmul.u32.u64.compose %v699, %v698
    %v701 = vextract.low.u32 %v700
    %v702 = vextract.high.u32 %v700
    %v703 = vmul.u32.u64.compose %v699, %v694
    %v704 = vextract.low.u32 %v703
    %v705 = vextract.high.u32 %v703
    %v706 = vmul.u32 %v699, %v690
    %v707 = vadd.s32 %v702, %v704
    %vm708 = vc.u32 %v702, %v704
    %v709 = vadd.s32 %v705, 1
    %v710 = vsel %vm708, %v709, %v705
    %v711 = vadd.s32 %v706, %v710
    %v712 = vadd.s32 %v711, 536870912
    %v713 = vshrl.u32 %v712, 30
    %v714 = vshll.u32 %v713, 30
    %v715 = vsub.s32 %v711, %v714
    %vm716 = vcmp.lt.s32.totalorder %v715, 0
    %v717 = vsub.s32 0, %v715
    %v718 = vsel %vm716, %v717, %v715
    %v719 = vclz %v718
    %v720 = vsub.s32 %v719, 2
    %vm721 = vcmp.gt.s32.totalorder 0, %v720
    %v722 = vsel %vm721, 0, %v720
    %v723 = vsub.s32 32, %v722
    %v724 = vshll.u32 %v715, %v722
    %v725 = vshrl.u32 %v707, %v723
    %v726 = vor.u32 %v724, %v725
    %v727 = vsub.s32 4294967266, %v722
    %v728 = vadd.s32 %v727, 127
    %v729 = vshll.u32 %v728, 23
    %v730 = vor.u32 4788187, %v729
    %v731 = vand.u32 2147483647, %v730
    %v733 = vcvt.s32.f32 %v726
    %v734 = vmul.f32 %v733, %v731
    %v735 = vxor.u32 %v734, 2147483648
    %v736 = vsel %vm653, %v735, %v734
    %v737 = vsub.s32 4, %v713
    %v738 = vsel %vm653, %v737, %v713
    %v739 = vsel %vm652, %v227, %v736
    %v740 = vsel %vm652, 0, %v738
    %v741 = vcosq.f32.pop %v739
    %v742 = vsinq.f32.pop %v739
    %vm743 = vweird.f32 %v227
    %v744 = vadd.s32 %v740, 3
    %v745 = vand.u32 %v744, 3
    %vm746 = vcmp.lt.s32.totalorder %v745, 2
    %vm747 = vcmp.eq.s32.totalorder %v745, 0
    %v748 = vxor.u32 %v742, 2147483648
    %v749 = vsel %vm747, %v741, %v748
    %vm750 = vcmp.eq.s32.totalorder %v745, 2
    %v751 = vxor.u32 %v741, 2147483648
    %v752 = vsel %vm750, %v751, %v742
    %v753 = vsel %vm746, %v749, %v752
    %v754 = vsel %vm743, nan, %v753
    %v755 = vand.u32 2147483647, %v228
    %vm756 = vcmp.le.f32.partialorder %v755, 0.7853982
    %vm757 = vcmp.lt.s32.totalorder %v228, 0
    %v758 = vand.u32 %v228, 2139095040
    %v759 = vshrl.u32 %v758, 23
    %v760 = vsub.s32 %v759, 127
    %v761 = vand.u32 2147483647, %v228
    %v762 = vand.u32 %v761, 8388607
    %v763 = vor.u32 %v762, 8388608
    %v764 = vsub.s32 0, %v763
    %v765 = vadd.s32 %v760, 1
    %vm766 = vcmp.gt.s32.totalorder %v765, 0
    %v767 = vsel %vm766, %v765, 0
    %v768 = vshrl.u32 %v767, 5
    %v769 = vand.u32 %v767, 31
    %v770 = vsub.s32 32, %v769
    %v771 = vshrl.u32 683565275, %v770
    %v772 = vshll.u32 683565275, %v769
    %v773 = vshrl.u32 2475754826, %v770
    %v774 = vor.u32 %v772, %v773
    %v775 = vshll.u32 2475754826, %v769
    %v776 = vshrl.u32 2131351028, %v770
    %v777 = vor.u32 %v775, %v776
    %v778 = vshll.u32 2131351028, %v769
    %v779 = vshrl.u32 2102212464, %v770
    %v780 = vor.u32 %v778, %v779
    %v781 = vshll.u32 2102212464, %v769
    %v782 = vshrl.u32 920167782, %v770
    %v783 = vor.u32 %v781, %v782
    %v784 = vshll.u32 920167782, %v769
    %v785 = vshrl.u32 1326507024, %v770
    %v786 = vor.u32 %v784, %v785
    %vm787 = vcmp.lt.s32.totalorder %v768, 1
    %vm788 = vcmp.lt.s32.totalorder %v768, 2
    %vm789 = vcmp.lt.s32.totalorder %v768, 3
    %vm790 = vcmp.lt.s32.totalorder %v768, 4
    %v791 = vsel %vm787, %v771, %v774
    %v792 = vsel %vm790, %v780, 2102212464
    %v793 = vsel %vm789, %v777, %v792
    %v794 = vsel %vm788, %v791, %v793
    %v795 = vsel %vm787, %v774, %v777
    %v796 = vsel %vm790, %v783, 920167782
    %v797 = vsel %vm789, %v780, %v796
    %v798 = vsel %vm788, %v795, %v797
    %v799 = vsel %vm787, %v777, %v780
    %v800 = vsel %vm790, %v786, 1326507024
    %v801 = vsel %vm789, %v783, %v800
    %v802 = vsel %vm788, %v799, %v801
    %v803 = vshll.u32 %v763, 8
    %v804 = vmul.u32.u64.compose %v803, %v802
    %v805 = vextract.low.u32 %v804
    %v806 = vextract.high.u32 %v804
    %v807 = vmul.u32.u64.compose %v803, %v798
    %v808 = vextract.low.u32 %v807
    %v809 = vextract.high.u32 %v807
    %v810 = vmul.u32 %v803, %v794
    %v811 = vadd.s32 %v806, %v808
    %vm812 = vc.u32 %v806, %v808
    %v813 = vadd.s32 %v809, 1
    %v814 = vsel %vm812, %v813, %v809
    %v815 = vadd.s32 %v810, %v814
    %v816 = vadd.s32 %v815, 536870912
    %v817 = vshrl.u32 %v816, 30
    %v818 = vshll.u32 %v817, 30
    %v819 = vsub.s32 %v815, %v818
    %vm820 = vcmp.lt.s32.totalorder %v819, 0
    %v821 = vsub.s32 0, %v819
    %v822 = vsel %vm820, %v821, %v819
    %v823 = vclz %v822
    %v824 = vsub.s32 %v823, 2
    %vm825 = vcmp.gt.s32.totalorder 0, %v824
    %v826 = vsel %vm825, 0, %v824
    %v827 = vsub.s32 32, %v826
    %v828 = vshll.u32 %v819, %v826
    %v829 = vshrl.u32 %v811, %v827
    %v830 = vor.u32 %v828, %v829
    %v831 = vsub.s32 4294967266, %v826
    %v832 = vadd.s32 %v831, 127
    %v833 = vshll.u32 %v832, 23
    %v834 = vor.u32 4788187, %v833
    %v835 = vand.u32 2147483647, %v834
    %v837 = vcvt.s32.f32 %v830
    %v838 = vmul.f32 %v837, %v835
    %v839 = vxor.u32 %v838, 2147483648
    %v840 = vsel %vm757, %v839, %v838
    %v841 = vsub.s32 4, %v817
    %v842 = vsel %vm757, %v841, %v817
    %v843 = vsel %vm756, %v228, %v840
    %v844 = vsel %vm756, 0, %v842
    %v845 = vcosq.f32.pop %v843
    %v846 = vsinq.f32.pop %v843
    %vm847 = vweird.f32 %v228
    %v848 = vadd.s32 %v844, 3
    %v849 = vand.u32 %v848, 3
    %vm850 = vcmp.lt.s32.totalorder %v849, 2
    %vm851 = vcmp.eq.s32.totalorder %v849, 0
    %v852 = vxor.u32 %v846, 2147483648
    %v853 = vsel %vm851, %v845, %v852
    %vm854 = vcmp.eq.s32.totalorder %v849, 2
    %v855 = vxor.u32 %v845, 2147483648
    %v856 = vsel %vm854, %v855, %v846
    %v857 = vsel %vm850, %v853, %v856
    %v858 = vsel %vm847, nan, %v857
    %v859 = vand.u32 2147483647, %v229
    %vm860 = vcmp.le.f32.partialorder %v859, 0.7853982
    %vm861 = vcmp.lt.s32.totalorder %v229, 0
    %v862 = vand.u32 %v229, 2139095040
    %v863 = vshrl.u32 %v862, 23
    %v864 = vsub.s32 %v863, 127
    %v865 = vand.u32 2147483647, %v229
    %v866 = vand.u32 %v865, 8388607
    %v867 = vor.u32 %v866, 8388608
    %v868 = vsub.s32 0, %v867
    %v869 = vadd.s32 %v864, 1
    %vm870 = vcmp.gt.s32.totalorder %v869, 0
    %v871 = vsel %vm870, %v869, 0
    %v872 = vshrl.u32 %v871, 5
    %v873 = vand.u32 %v871, 31
    %v874 = vsub.s32 32, %v873
    %v875 = vshrl.u32 683565275, %v874
    %v876 = vshll.u32 683565275, %v873
    %v877 = vshrl.u32 2475754826, %v874
    %v878 = vor.u32 %v876, %v877
    %v879 = vshll.u32 2475754826, %v873
    %v880 = vshrl.u32 2131351028, %v874
    %v881 = vor.u32 %v879, %v880
    %v882 = vshll.u32 2131351028, %v873
    %v883 = vshrl.u32 2102212464, %v874
    %v884 = vor.u32 %v882, %v883
    %v885 = vshll.u32 2102212464, %v873
    %v886 = vshrl.u32 920167782, %v874
    %v887 = vor.u32 %v885, %v886
    %v888 = vshll.u32 920167782, %v873
    %v889 = vshrl.u32 1326507024, %v874
    %v890 = vor.u32 %v888, %v889
    %vm891 = vcmp.lt.s32.totalorder %v872, 1
    %vm892 = vcmp.lt.s32.totalorder %v872, 2
    %vm893 = vcmp.lt.s32.totalorder %v872, 3
    %vm894 = vcmp.lt.s32.totalorder %v872, 4
    %v895 = vsel %vm891, %v875, %v878
    %v896 = vsel %vm894, %v884, 2102212464
    %v897 = vsel %vm893, %v881, %v896
    %v898 = vsel %vm892, %v895, %v897
    %v899 = vsel %vm891, %v878, %v881
    %v900 = vsel %vm894, %v887, 920167782
    %v901 = vsel %vm893, %v884, %v900
    %v902 = vsel %vm892, %v899, %v901
    %v903 = vsel %vm891, %v881, %v884
    %v904 = vsel %vm894, %v890, 1326507024
    %v905 = vsel %vm893, %v887, %v904
    %v906 = vsel %vm892, %v903, %v905
    %v907 = vshll.u32 %v867, 8
    %v908 = vmul.u32.u64.compose %v907, %v906
    %v909 = vextract.low.u32 %v908
    %v910 = vextract.high.u32 %v908
    %v911 = vmul.u32.u64.compose %v907, %v902
    %v912 = vextract.low.u32 %v911
    %v913 = vextract.high.u32 %v911
    %v914 = vmul.u32 %v907, %v898
    %v915 = vadd.s32 %v910, %v912
    %vm916 = vc.u32 %v910, %v912
    %v917 = vadd.s32 %v913, 1
    %v918 = vsel %vm916, %v917, %v913
    %v919 = vadd.s32 %v914, %v918
    %v920 = vadd.s32 %v919, 536870912
    %v921 = vshrl.u32 %v920, 30
    %v922 = vshll.u32 %v921, 30
    %v923 = vsub.s32 %v919, %v922
    %vm924 = vcmp.lt.s32.totalorder %v923, 0
    %v925 = vsub.s32 0, %v923
    %v926 = vsel %vm924, %v925, %v923
    %v927 = vclz %v926
    %v928 = vsub.s32 %v927, 2
    %vm929 = vcmp.gt.s32.totalorder 0, %v928
    %v930 = vsel %vm929, 0, %v928
    %v931 = vsub.s32 32, %v930
    %v932 = vshll.u32 %v923, %v930
    %v933 = vshrl.u32 %v915, %v931
    %v934 = vor.u32 %v932, %v933
    %v935 = vsub.s32 4294967266, %v930
    %v936 = vadd.s32 %v935, 127
    %v937 = vshll.u32 %v936, 23
    %v938 = vor.u32 4788187, %v937
    %v939 = vand.u32 2147483647, %v938
    %v941 = vcvt.s32.f32 %v934
    %v942 = vmul.f32 %v941, %v939
    %v943 = vxor.u32 %v942, 2147483648
    %v944 = vsel %vm861, %v943, %v942
    %v945 = vsub.s32 4, %v921
    %v946 = vsel %vm861, %v945, %v921
    %v947 = vsel %vm860, %v229, %v944
    %v948 = vsel %vm860, 0, %v946
    %v949 = vcosq.f32.pop %v947
    %v950 = vsinq.f32.pop %v947
    %vm951 = vweird.f32 %v229
    %v952 = vadd.s32 %v948, 3
    %v953 = vand.u32 %v952, 3
    %vm954 = vcmp.lt.s32.totalorder %v953, 2
    %vm955 = vcmp.eq.s32.totalorder %v953, 0
    %v956 = vxor.u32 %v950, 2147483648
    %v957 = vsel %vm955, %v949, %v956
    %vm958 = vcmp.eq.s32.totalorder %v953, 2
    %v959 = vxor.u32 %v949, 2147483648
    %v960 = vsel %vm958, %v959, %v950
    %v961 = vsel %vm954, %v957, %v960
    %v962 = vsel %vm951, nan, %v961
    %v963 = vand.u32 2147483647, %v230
    %vm964 = vcmp.le.f32.partialorder %v963, 0.7853982
    %vm965 = vcmp.lt.s32.totalorder %v230, 0
    %v966 = vand.u32 %v230, 2139095040
    %v967 = vshrl.u32 %v966, 23
    %v968 = vsub.s32 %v967, 127
    %v969 = vand.u32 2147483647, %v230
    %v970 = vand.u32 %v969, 8388607
    %v971 = vor.u32 %v970, 8388608
    %v972 = vsub.s32 0, %v971
    %v973 = vadd.s32 %v968, 1
    %vm974 = vcmp.gt.s32.totalorder %v973, 0
    %v975 = vsel %vm974, %v973, 0
    %v976 = vshrl.u32 %v975, 5
    %v977 = vand.u32 %v975, 31
    %v978 = vsub.s32 32, %v977
    %v979 = vshrl.u32 683565275, %v978
    %v980 = vshll.u32 683565275, %v977
    %v981 = vshrl.u32 2475754826, %v978
    %v982 = vor.u32 %v980, %v981
    %v983 = vshll.u32 2475754826, %v977
    %v984 = vshrl.u32 2131351028, %v978
    %v985 = vor.u32 %v983, %v984
    %v986 = vshll.u32 2131351028, %v977
    %v987 = vshrl.u32 2102212464, %v978
    %v988 = vor.u32 %v986, %v987
    %v989 = vshll.u32 2102212464, %v977
    %v990 = vshrl.u32 920167782, %v978
    %v991 = vor.u32 %v989, %v990
    %v992 = vshll.u32 920167782, %v977
    %v993 = vshrl.u32 1326507024, %v978
    %v994 = vor.u32 %v992, %v993
    %vm995 = vcmp.lt.s32.totalorder %v976, 1
    %vm996 = vcmp.lt.s32.totalorder %v976, 2
    %vm997 = vcmp.lt.s32.totalorder %v976, 3
    %vm998 = vcmp.lt.s32.totalorder %v976, 4
    %v999 = vsel %vm995, %v979, %v982
    %v1000 = vsel %vm998, %v988, 2102212464
    %v1001 = vsel %vm997, %v985, %v1000
    %v1002 = vsel %vm996, %v999, %v1001
    %v1003 = vsel %vm995, %v982, %v985
    %v1004 = vsel %vm998, %v991, 920167782
    %v1005 = vsel %vm997, %v988, %v1004
    %v1006 = vsel %vm996, %v1003, %v1005
    %v1007 = vsel %vm995, %v985, %v988
    %v1008 = vsel %vm998, %v994, 1326507024
    %v1009 = vsel %vm997, %v991, %v1008
    %v1010 = vsel %vm996, %v1007, %v1009
    %v1011 = vshll.u32 %v971, 8
    %v1012 = vmul.u32.u64.compose %v1011, %v1010
    %v1013 = vextract.low.u32 %v1012
    %v1014 = vextract.high.u32 %v1012
    %v1015 = vmul.u32.u64.compose %v1011, %v1006
    %v1016 = vextract.low.u32 %v1015
    %v1017 = vextract.high.u32 %v1015
    %v1018 = vmul.u32 %v1011, %v1002
    %v1019 = vadd.s32 %v1014, %v1016
    %vm1020 = vc.u32 %v1014, %v1016
    %v1021 = vadd.s32 %v1017, 1
    %v1022 = vsel %vm1020, %v1021, %v1017
    %v1023 = vadd.s32 %v1018, %v1022
    %v1024 = vadd.s32 %v1023, 536870912
    %v1025 = vshrl.u32 %v1024, 30
    %v1026 = vshll.u32 %v1025, 30
    %v1027 = vsub.s32 %v1023, %v1026
    %vm1028 = vcmp.lt.s32.totalorder %v1027, 0
    %v1029 = vsub.s32 0, %v1027
    %v1030 = vsel %vm1028, %v1029, %v1027
    %v1031 = vclz %v1030
    %v1032 = vsub.s32 %v1031, 2
    %vm1033 = vcmp.gt.s32.totalorder 0, %v1032
    %v1034 = vsel %vm1033, 0, %v1032
    %v1035 = vsub.s32 32, %v1034
    %v1036 = vshll.u32 %v1027, %v1034
    %v1037 = vshrl.u32 %v1019, %v1035
    %v1038 = vor.u32 %v1036, %v1037
    %v1039 = vsub.s32 4294967266, %v1034
    %v1040 = vadd.s32 %v1039, 127
    %v1041 = vshll.u32 %v1040, 23
    %v1042 = vor.u32 4788187, %v1041
    %v1043 = vand.u32 2147483647, %v1042
    %v1045 = vcvt.s32.f32 %v1038
    %v1046 = vmul.f32 %v1045, %v1043
    %v1047 = vxor.u32 %v1046, 2147483648
    %v1048 = vsel %vm965, %v1047, %v1046
    %v1049 = vsub.s32 4, %v1025
    %v1050 = vsel %vm965, %v1049, %v1025
    %v1051 = vsel %vm964, %v230, %v1048
    %v1052 = vsel %vm964, 0, %v1050
    %v1053 = vcosq.f32.pop %v1051
    %v1054 = vsinq.f32.pop %v1051
    %vm1055 = vweird.f32 %v230
    %v1056 = vadd.s32 %v1052, 3
    %v1057 = vand.u32 %v1056, 3
    %vm1058 = vcmp.lt.s32.totalorder %v1057, 2
    %vm1059 = vcmp.eq.s32.totalorder %v1057, 0
    %v1060 = vxor.u32 %v1054, 2147483648
    %v1061 = vsel %vm1059, %v1053, %v1060
    %vm1062 = vcmp.eq.s32.totalorder %v1057, 2
    %v1063 = vxor.u32 %v1053, 2147483648
    %v1064 = vsel %vm1062, %v1063, %v1054
    %v1065 = vsel %vm1058, %v1061, %v1064
    %v1066 = vsel %vm1055, nan, %v1065
    %v1067 = vand.u32 2147483647, %v231
    %vm1068 = vcmp.le.f32.partialorder %v1067, 0.7853982
    %vm1069 = vcmp.lt.s32.totalorder %v231, 0
    %v1070 = vand.u32 %v231, 2139095040
    %v1071 = vshrl.u32 %v1070, 23
    %v1072 = vsub.s32 %v1071, 127
    %v1073 = vand.u32 2147483647, %v231
    %v1074 = vand.u32 %v1073, 8388607
    %v1075 = vor.u32 %v1074, 8388608
    %v1076 = vsub.s32 0, %v1075
    %v1077 = vadd.s32 %v1072, 1
    %vm1078 = vcmp.gt.s32.totalorder %v1077, 0
    %v1079 = vsel %vm1078, %v1077, 0
    %v1080 = vshrl.u32 %v1079, 5
    %v1081 = vand.u32 %v1079, 31
    %v1082 = vsub.s32 32, %v1081
    %v1083 = vshrl.u32 683565275, %v1082
    %v1084 = vshll.u32 683565275, %v1081
    %v1085 = vshrl.u32 2475754826, %v1082
    %v1086 = vor.u32 %v1084, %v1085
    %v1087 = vshll.u32 2475754826, %v1081
    %v1088 = vshrl.u32 2131351028, %v1082
    %v1089 = vor.u32 %v1087, %v1088
    %v1090 = vshll.u32 2131351028, %v1081
    %v1091 = vshrl.u32 2102212464, %v1082
    %v1092 = vor.u32 %v1090, %v1091
    %v1093 = vshll.u32 2102212464, %v1081
    %v1094 = vshrl.u32 920167782, %v1082
    %v1095 = vor.u32 %v1093, %v1094
    %v1096 = vshll.u32 920167782, %v1081
    %v1097 = vshrl.u32 1326507024, %v1082
    %v1098 = vor.u32 %v1096, %v1097
    %vm1099 = vcmp.lt.s32.totalorder %v1080, 1
    %vm1100 = vcmp.lt.s32.totalorder %v1080, 2
    %vm1101 = vcmp.lt.s32.totalorder %v1080, 3
    %vm1102 = vcmp.lt.s32.totalorder %v1080, 4
    %v1103 = vsel %vm1099, %v1083, %v1086
    %v1104 = vsel %vm1102, %v1092, 2102212464
    %v1105 = vsel %vm1101, %v1089, %v1104
    %v1106 = vsel %vm1100, %v1103, %v1105
    %v1107 = vsel %vm1099, %v1086, %v1089
    %v1108 = vsel %vm1102, %v1095, 920167782
    %v1109 = vsel %vm1101, %v1092, %v1108
    %v1110 = vsel %vm1100, %v1107, %v1109
    %v1111 = vsel %vm1099, %v1089, %v1092
    %v1112 = vsel %vm1102, %v1098, 1326507024
    %v1113 = vsel %vm1101, %v1095, %v1112
    %v1114 = vsel %vm1100, %v1111, %v1113
    %v1115 = vshll.u32 %v1075, 8
    %v1116 = vmul.u32.u64.compose %v1115, %v1114
    %v1117 = vextract.low.u32 %v1116
    %v1118 = vextract.high.u32 %v1116
    %v1119 = vmul.u32.u64.compose %v1115, %v1110
    %v1120 = vextract.low.u32 %v1119
    %v1121 = vextract.high.u32 %v1119
    %v1122 = vmul.u32 %v1115, %v1106
    %v1123 = vadd.s32 %v1118, %v1120
    %vm1124 = vc.u32 %v1118, %v1120
    %v1125 = vadd.s32 %v1121, 1
    %v1126 = vsel %vm1124, %v1125, %v1121
    %v1127 = vadd.s32 %v1122, %v1126
    %v1128 = vadd.s32 %v1127, 536870912
    %v1129 = vshrl.u32 %v1128, 30
    %v1130 = vshll.u32 %v1129, 30
    %v1131 = vsub.s32 %v1127, %v1130
    %vm1132 = vcmp.lt.s32.totalorder %v1131, 0
    %v1133 = vsub.s32 0, %v1131
    %v1134 = vsel %vm1132, %v1133, %v1131
    %v1135 = vclz %v1134
    %v1136 = vsub.s32 %v1135, 2
    %vm1137 = vcmp.gt.s32.totalorder 0, %v1136
    %v1138 = vsel %vm1137, 0, %v1136
    %v1139 = vsub.s32 32, %v1138
    %v1140 = vshll.u32 %v1131, %v1138
    %v1141 = vshrl.u32 %v1123, %v1139
    %v1142 = vor.u32 %v1140, %v1141
    %v1143 = vsub.s32 4294967266, %v1138
    %v1144 = vadd.s32 %v1143, 127
    %v1145 = vshll.u32 %v1144, 23
    %v1146 = vor.u32 4788187, %v1145
    %v1147 = vand.u32 2147483647, %v1146
    %v1149 = vcvt.s32.f32 %v1142
    %v1150 = vmul.f32 %v1149, %v1147
    %v1151 = vxor.u32 %v1150, 2147483648
    %v1152 = vsel %vm1069, %v1151, %v1150
    %v1153 = vsub.s32 4, %v1129
    %v1154 = vsel %vm1069, %v1153, %v1129
    %v1155 = vsel %vm1068, %v231, %v1152
    %v1156 = vsel %vm1068, 0, %v1154
    %v1157 = vcosq.f32.pop %v1155
    %v1158 = vsinq.f32.pop %v1155
    %vm1159 = vweird.f32 %v231
    %v1160 = vadd.s32 %v1156, 3
    %v1161 = vand.u32 %v1160, 3
    %vm1162 = vcmp.lt.s32.totalorder %v1161, 2
    %vm1163 = vcmp.eq.s32.totalorder %v1161, 0
    %v1164 = vxor.u32 %v1158, 2147483648
    %v1165 = vsel %vm1163, %v1157, %v1164
    %vm1166 = vcmp.eq.s32.totalorder %v1161, 2
    %v1167 = vxor.u32 %v1157, 2147483648
    %v1168 = vsel %vm1166, %v1167, %v1158
    %v1169 = vsel %vm1162, %v1165, %v1168
    %v1170 = vsel %vm1159, nan, %v1169
    %v1171 = vand.u32 2147483647, %v232
    %vm1172 = vcmp.le.f32.partialorder %v1171, 0.7853982
    %vm1173 = vcmp.lt.s32.totalorder %v232, 0
    %v1174 = vand.u32 %v232, 2139095040
    %v1175 = vshrl.u32 %v1174, 23
    %v1176 = vsub.s32 %v1175, 127
    %v1177 = vand.u32 2147483647, %v232
    %v1178 = vand.u32 %v1177, 8388607
    %v1179 = vor.u32 %v1178, 8388608
    %v1180 = vsub.s32 0, %v1179
    %v1181 = vadd.s32 %v1176, 1
    %vm1182 = vcmp.gt.s32.totalorder %v1181, 0
    %v1183 = vsel %vm1182, %v1181, 0
    %v1184 = vshrl.u32 %v1183, 5
    %v1185 = vand.u32 %v1183, 31
    %v1186 = vsub.s32 32, %v1185
    %v1187 = vshrl.u32 683565275, %v1186
    %v1188 = vshll.u32 683565275, %v1185
    %v1189 = vshrl.u32 2475754826, %v1186
    %v1190 = vor.u32 %v1188, %v1189
    %v1191 = vshll.u32 2475754826, %v1185
    %v1192 = vshrl.u32 2131351028, %v1186
    %v1193 = vor.u32 %v1191, %v1192
    %v1194 = vshll.u32 2131351028, %v1185
    %v1195 = vshrl.u32 2102212464, %v1186
    %v1196 = vor.u32 %v1194, %v1195
    %v1197 = vshll.u32 2102212464, %v1185
    %v1198 = vshrl.u32 920167782, %v1186
    %v1199 = vor.u32 %v1197, %v1198
    %v1200 = vshll.u32 920167782, %v1185
    %v1201 = vshrl.u32 1326507024, %v1186
    %v1202 = vor.u32 %v1200, %v1201
    %vm1203 = vcmp.lt.s32.totalorder %v1184, 1
    %vm1204 = vcmp.lt.s32.totalorder %v1184, 2
    %vm1205 = vcmp.lt.s32.totalorder %v1184, 3
    %vm1206 = vcmp.lt.s32.totalorder %v1184, 4
    %v1207 = vsel %vm1203, %v1187, %v1190
    %v1208 = vsel %vm1206, %v1196, 2102212464
    %v1209 = vsel %vm1205, %v1193, %v1208
    %v1210 = vsel %vm1204, %v1207, %v1209
    %v1211 = vsel %vm1203, %v1190, %v1193
    %v1212 = vsel %vm1206, %v1199, 920167782
    %v1213 = vsel %vm1205, %v1196, %v1212
    %v1214 = vsel %vm1204, %v1211, %v1213
    %v1215 = vsel %vm1203, %v1193, %v1196
    %v1216 = vsel %vm1206, %v1202, 1326507024
    %v1217 = vsel %vm1205, %v1199, %v1216
    %v1218 = vsel %vm1204, %v1215, %v1217
    %v1219 = vshll.u32 %v1179, 8
    %v1220 = vmul.u32.u64.compose %v1219, %v1218
    %v1221 = vextract.low.u32 %v1220
    %v1222 = vextract.high.u32 %v1220
    %v1223 = vmul.u32.u64.compose %v1219, %v1214
    %v1224 = vextract.low.u32 %v1223
    %v1225 = vextract.high.u32 %v1223
    %v1226 = vmul.u32 %v1219, %v1210
    %v1227 = vadd.s32 %v1222, %v1224
    %vm1228 = vc.u32 %v1222, %v1224
    %v1229 = vadd.s32 %v1225, 1
    %v1230 = vsel %vm1228, %v1229, %v1225
    %v1231 = vadd.s32 %v1226, %v1230
    %v1232 = vadd.s32 %v1231, 536870912
    %v1233 = vshrl.u32 %v1232, 30
    %v1234 = vshll.u32 %v1233, 30
    %v1235 = vsub.s32 %v1231, %v1234
    %vm1236 = vcmp.lt.s32.totalorder %v1235, 0
    %v1237 = vsub.s32 0, %v1235
    %v1238 = vsel %vm1236, %v1237, %v1235
    %v1239 = vclz %v1238
    %v1240 = vsub.s32 %v1239, 2
    %vm1241 = vcmp.gt.s32.totalorder 0, %v1240
    %v1242 = vsel %vm1241, 0, %v1240
    %v1243 = vsub.s32 32, %v1242
    %v1244 = vshll.u32 %v1235, %v1242
    %v1245 = vshrl.u32 %v1227, %v1243
    %v1246 = vor.u32 %v1244, %v1245
    %v1247 = vsub.s32 4294967266, %v1242
    %v1248 = vadd.s32 %v1247, 127
    %v1249 = vshll.u32 %v1248, 23
    %v1250 = vor.u32 4788187, %v1249
    %v1251 = vand.u32 2147483647, %v1250
    %v1253 = vcvt.s32.f32 %v1246
    %v1254 = vmul.f32 %v1253, %v1251
    %v1255 = vxor.u32 %v1254, 2147483648
    %v1256 = vsel %vm1173, %v1255, %v1254
    %v1257 = vsub.s32 4, %v1233
    %v1258 = vsel %vm1173, %v1257, %v1233
    %v1259 = vsel %vm1172, %v232, %v1256
    %v1260 = vsel %vm1172, 0, %v1258
    %v1261 = vcosq.f32.pop %v1259
    %v1262 = vsinq.f32.pop %v1259
    %vm1263 = vweird.f32 %v232
    %v1264 = vadd.s32 %v1260, 3
    %v1265 = vand.u32 %v1264, 3
    %vm1266 = vcmp.lt.s32.totalorder %v1265, 2
    %vm1267 = vcmp.eq.s32.totalorder %v1265, 0
    %v1268 = vxor.u32 %v1262, 2147483648
    %v1269 = vsel %vm1267, %v1261, %v1268
    %vm1270 = vcmp.eq.s32.totalorder %v1265, 2
    %v1271 = vxor.u32 %v1261, 2147483648
    %v1272 = vsel %vm1270, %v1271, %v1262
    %v1273 = vsel %vm1266, %v1269, %v1272
    %v1274 = vsel %vm1263, nan, %v1273
    %v1275 = vand.u32 2147483647, %v233
    %vm1276 = vcmp.le.f32.partialorder %v1275, 0.7853982
    %vm1277 = vcmp.lt.s32.totalorder %v233, 0
    %v1278 = vand.u32 %v233, 2139095040
    %v1279 = vshrl.u32 %v1278, 23
    %v1280 = vsub.s32 %v1279, 127
    %v1281 = vand.u32 2147483647, %v233
    %v1282 = vand.u32 %v1281, 8388607
    %v1283 = vor.u32 %v1282, 8388608
    %v1284 = vsub.s32 0, %v1283
    %v1285 = vadd.s32 %v1280, 1
    %vm1286 = vcmp.gt.s32.totalorder %v1285, 0
    %v1287 = vsel %vm1286, %v1285, 0
    %v1288 = vshrl.u32 %v1287, 5
    %v1289 = vand.u32 %v1287, 31
    %v1290 = vsub.s32 32, %v1289
    %v1291 = vshrl.u32 683565275, %v1290
    %v1292 = vshll.u32 683565275, %v1289
    %v1293 = vshrl.u32 2475754826, %v1290
    %v1294 = vor.u32 %v1292, %v1293
    %v1295 = vshll.u32 2475754826, %v1289
    %v1296 = vshrl.u32 2131351028, %v1290
    %v1297 = vor.u32 %v1295, %v1296
    %v1298 = vshll.u32 2131351028, %v1289
    %v1299 = vshrl.u32 2102212464, %v1290
    %v1300 = vor.u32 %v1298, %v1299
    %v1301 = vshll.u32 2102212464, %v1289
    %v1302 = vshrl.u32 920167782, %v1290
    %v1303 = vor.u32 %v1301, %v1302
    %v1304 = vshll.u32 920167782, %v1289
    %v1305 = vshrl.u32 1326507024, %v1290
    %v1306 = vor.u32 %v1304, %v1305
    %vm1307 = vcmp.lt.s32.totalorder %v1288, 1
    %vm1308 = vcmp.lt.s32.totalorder %v1288, 2
    %vm1309 = vcmp.lt.s32.totalorder %v1288, 3
    %vm1310 = vcmp.lt.s32.totalorder %v1288, 4
    %v1311 = vsel %vm1307, %v1291, %v1294
    %v1312 = vsel %vm1310, %v1300, 2102212464
    %v1313 = vsel %vm1309, %v1297, %v1312
    %v1314 = vsel %vm1308, %v1311, %v1313
    %v1315 = vsel %vm1307, %v1294, %v1297
    %v1316 = vsel %vm1310, %v1303, 920167782
    %v1317 = vsel %vm1309, %v1300, %v1316
    %v1318 = vsel %vm1308, %v1315, %v1317
    %v1319 = vsel %vm1307, %v1297, %v1300
    %v1320 = vsel %vm1310, %v1306, 1326507024
    %v1321 = vsel %vm1309, %v1303, %v1320
    %v1322 = vsel %vm1308, %v1319, %v1321
    %v1323 = vshll.u32 %v1283, 8
    %v1324 = vmul.u32.u64.compose %v1323, %v1322
    %v1325 = vextract.low.u32 %v1324
    %v1326 = vextract.high.u32 %v1324
    %v1327 = vmul.u32.u64.compose %v1323, %v1318
    %v1328 = vextract.low.u32 %v1327
    %v1329 = vextract.high.u32 %v1327
    %v1330 = vmul.u32 %v1323, %v1314
    %v1331 = vadd.s32 %v1326, %v1328
    %vm1332 = vc.u32 %v1326, %v1328
    %v1333 = vadd.s32 %v1329, 1
    %v1334 = vsel %vm1332, %v1333, %v1329
    %v1335 = vadd.s32 %v1330, %v1334
    %v1336 = vadd.s32 %v1335, 536870912
    %v1337 = vshrl.u32 %v1336, 30
    %v1338 = vshll.u32 %v1337, 30
    %v1339 = vsub.s32 %v1335, %v1338
    %vm1340 = vcmp.lt.s32.totalorder %v1339, 0
    %v1341 = vsub.s32 0, %v1339
    %v1342 = vsel %vm1340, %v1341, %v1339
    %v1343 = vclz %v1342
    %v1344 = vsub.s32 %v1343, 2
    %vm1345 = vcmp.gt.s32.totalorder 0, %v1344
    %v1346 = vsel %vm1345, 0, %v1344
    %v1347 = vsub.s32 32, %v1346
    %v1348 = vshll.u32 %v1339, %v1346
    %v1349 = vshrl.u32 %v1331, %v1347
    %v1350 = vor.u32 %v1348, %v1349
    %v1351 = vsub.s32 4294967266, %v1346
    %v1352 = vadd.s32 %v1351, 127
    %v1353 = vshll.u32 %v1352, 23
    %v1354 = vor.u32 4788187, %v1353
    %v1355 = vand.u32 2147483647, %v1354
    %v1357 = vcvt.s32.f32 %v1350
    %v1358 = vmul.f32 %v1357, %v1355
    %v1359 = vxor.u32 %v1358, 2147483648
    %v1360 = vsel %vm1277, %v1359, %v1358
    %v1361 = vsub.s32 4, %v1337
    %v1362 = vsel %vm1277, %v1361, %v1337
    %v1363 = vsel %vm1276, %v233, %v1360
    %v1364 = vsel %vm1276, 0, %v1362
    %v1365 = vcosq.f32.pop %v1363
    %v1366 = vsinq.f32.pop %v1363
    %vm1367 = vweird.f32 %v233
    %v1368 = vadd.s32 %v1364, 3
    %v1369 = vand.u32 %v1368, 3
    %vm1370 = vcmp.lt.s32.totalorder %v1369, 2
    %vm1371 = vcmp.eq.s32.totalorder %v1369, 0
    %v1372 = vxor.u32 %v1366, 2147483648
    %v1373 = vsel %vm1371, %v1365, %v1372
    %vm1374 = vcmp.eq.s32.totalorder %v1369, 2
    %v1375 = vxor.u32 %v1365, 2147483648
    %v1376 = vsel %vm1374, %v1375, %v1366
    %v1377 = vsel %vm1370, %v1373, %v1376
    %v1378 = vsel %vm1367, nan, %v1377
    %v1379 = vand.u32 2147483647, %v234
    %vm1380 = vcmp.le.f32.partialorder %v1379, 0.7853982
    %vm1381 = vcmp.lt.s32.totalorder %v234, 0
    %v1382 = vand.u32 %v234, 2139095040
    %v1383 = vshrl.u32 %v1382, 23
    %v1384 = vsub.s32 %v1383, 127
    %v1385 = vand.u32 2147483647, %v234
    %v1386 = vand.u32 %v1385, 8388607
    %v1387 = vor.u32 %v1386, 8388608
    %v1388 = vsub.s32 0, %v1387
    %v1389 = vadd.s32 %v1384, 1
    %vm1390 = vcmp.gt.s32.totalorder %v1389, 0
    %v1391 = vsel %vm1390, %v1389, 0
    %v1392 = vshrl.u32 %v1391, 5
    %v1393 = vand.u32 %v1391, 31
    %v1394 = vsub.s32 32, %v1393
    %v1395 = vshrl.u32 683565275, %v1394
    %v1396 = vshll.u32 683565275, %v1393
    %v1397 = vshrl.u32 2475754826, %v1394
    %v1398 = vor.u32 %v1396, %v1397
    %v1399 = vshll.u32 2475754826, %v1393
    %v1400 = vshrl.u32 2131351028, %v1394
    %v1401 = vor.u32 %v1399, %v1400
    %v1402 = vshll.u32 2131351028, %v1393
    %v1403 = vshrl.u32 2102212464, %v1394
    %v1404 = vor.u32 %v1402, %v1403
    %v1405 = vshll.u32 2102212464, %v1393
    %v1406 = vshrl.u32 920167782, %v1394
    %v1407 = vor.u32 %v1405, %v1406
    %v1408 = vshll.u32 920167782, %v1393
    %v1409 = vshrl.u32 1326507024, %v1394
    %v1410 = vor.u32 %v1408, %v1409
    %vm1411 = vcmp.lt.s32.totalorder %v1392, 1
    %vm1412 = vcmp.lt.s32.totalorder %v1392, 2
    %vm1413 = vcmp.lt.s32.totalorder %v1392, 3
    %vm1414 = vcmp.lt.s32.totalorder %v1392, 4
    %v1415 = vsel %vm1411, %v1395, %v1398
    %v1416 = vsel %vm1414, %v1404, 2102212464
    %v1417 = vsel %vm1413, %v1401, %v1416
    %v1418 = vsel %vm1412, %v1415, %v1417
    %v1419 = vsel %vm1411, %v1398, %v1401
    %v1420 = vsel %vm1414, %v1407, 920167782
    %v1421 = vsel %vm1413, %v1404, %v1420
    %v1422 = vsel %vm1412, %v1419, %v1421
    %v1423 = vsel %vm1411, %v1401, %v1404
    %v1424 = vsel %vm1414, %v1410, 1326507024
    %v1425 = vsel %vm1413, %v1407, %v1424
    %v1426 = vsel %vm1412, %v1423, %v1425
    %v1427 = vshll.u32 %v1387, 8
    %v1428 = vmul.u32.u64.compose %v1427, %v1426
    %v1429 = vextract.low.u32 %v1428
    %v1430 = vextract.high.u32 %v1428
    %v1431 = vmul.u32.u64.compose %v1427, %v1422
    %v1432 = vextract.low.u32 %v1431
    %v1433 = vextract.high.u32 %v1431
    %v1434 = vmul.u32 %v1427, %v1418
    %v1435 = vadd.s32 %v1430, %v1432
    %vm1436 = vc.u32 %v1430, %v1432
    %v1437 = vadd.s32 %v1433, 1
    %v1438 = vsel %vm1436, %v1437, %v1433
    %v1439 = vadd.s32 %v1434, %v1438
    %v1440 = vadd.s32 %v1439, 536870912
    %v1441 = vshrl.u32 %v1440, 30
    %v1442 = vshll.u32 %v1441, 30
    %v1443 = vsub.s32 %v1439, %v1442
    %vm1444 = vcmp.lt.s32.totalorder %v1443, 0
    %v1445 = vsub.s32 0, %v1443
    %v1446 = vsel %vm1444, %v1445, %v1443
    %v1447 = vclz %v1446
    %v1448 = vsub.s32 %v1447, 2
    %vm1449 = vcmp.gt.s32.totalorder 0, %v1448
    %v1450 = vsel %vm1449, 0, %v1448
    %v1451 = vsub.s32 32, %v1450
    %v1452 = vshll.u32 %v1443, %v1450
    %v1453 = vshrl.u32 %v1435, %v1451
    %v1454 = vor.u32 %v1452, %v1453
    %v1455 = vsub.s32 4294967266, %v1450
    %v1456 = vadd.s32 %v1455, 127
    %v1457 = vshll.u32 %v1456, 23
    %v1458 = vor.u32 4788187, %v1457
    %v1459 = vand.u32 2147483647, %v1458
    %v1461 = vcvt.s32.f32 %v1454
    %v1462 = vmul.f32 %v1461, %v1459
    %v1463 = vxor.u32 %v1462, 2147483648
    %v1464 = vsel %vm1381, %v1463, %v1462
    %v1465 = vsub.s32 4, %v1441
    %v1466 = vsel %vm1381, %v1465, %v1441
    %v1467 = vsel %vm1380, %v234, %v1464
    %v1468 = vsel %vm1380, 0, %v1466
    %v1469 = vcosq.f32.pop %v1467
    %v1470 = vsinq.f32.pop %v1467
    %vm1471 = vweird.f32 %v234
    %v1472 = vadd.s32 %v1468, 3
    %v1473 = vand.u32 %v1472, 3
    %vm1474 = vcmp.lt.s32.totalorder %v1473, 2
    %vm1475 = vcmp.eq.s32.totalorder %v1473, 0
    %v1476 = vxor.u32 %v1470, 2147483648
    %v1477 = vsel %vm1475, %v1469, %v1476
    %vm1478 = vcmp.eq.s32.totalorder %v1473, 2
    %v1479 = vxor.u32 %v1469, 2147483648
    %v1480 = vsel %vm1478, %v1479, %v1470
    %v1481 = vsel %vm1474, %v1477, %v1480
    %v1482 = vsel %vm1471, nan, %v1481
    %v1483 = vsel %vm55, %v30, %v338
    %v1484 = vsel %vm56, %v31, %v442
    %v1485 = vsel %vm57, %v32, %v546
    %v1486 = vsel %vm58, %v33, %v650
    %v1487 = vsel %vm59, %v34, %v754
    %v1488 = vsel %vm60, %v35, %v858
    %v1489 = vsel %vm61, %v36, %v962
    %v1490 = vsel %vm62, %v37, %v1066
    %v1491 = vsel %vm63, %v38, %v1170
    %v1492 = vsel %vm64, %v39, %v1274
    %v1493 = vsel %vm65, %v40, %v1378
    %v1494 = vsel %vm66, %v41, %v1482
    %v1495 = vld [vmem:[%s5] sm:$0xff]
    %v1496 = vld [vmem:[%s5 + $0x8] sm:$0xff]
    %v1497 = vld [vmem:[%s5 + $0x10] sm:$0xff]
    %v1498 = vld [vmem:[%s5 + $0x18] sm:$0xff]
    %v1499 = vld [vmem:[%s6] sm:$0xff]
    %v1500 = vld [vmem:[%s6 + $0x8] sm:$0xff]
    %v1501 = vld [vmem:[%s6 + $0x10] sm:$0xff]
    %v1502 = vld [vmem:[%s6 + $0x18] sm:$0xff]
    %1504 = vset.pattern.permute.xlu0 0
    %1505 = vperm.xlu0 %1504, %v1499
    %v1506 = vpop.permute.xlu0 %1505
    %1509 = vset.pattern.permute.xlu0 0
    %1510 = vperm.xlu0 %1509, %v1500
    %v1511 = vpop.permute.xlu0 %1510
    %1514 = vset.pattern.permute.xlu0 0
    %1515 = vperm.xlu0 %1514, %v1501
    %v1516 = vpop.permute.xlu0 %1515
    %1519 = vset.pattern.permute.xlu0 0
    %1520 = vperm.xlu0 %1519, %v1502
    %v1521 = vpop.permute.xlu0 %1520
    %vm1523 = vcmask 785408
    %v1525 = vsel %vm1523, %v1495, 0
    %v1528 = vsel %vm1523, %v1496, 0
    %v1531 = vsel %vm1523, %v1497, 0
    %v1534 = vsel %vm1523, %v1498, 0
    %1536 = vmatprep.subr.mxu0 0.0
    %1537 = vmatpush1.msra.mxu0 0.0
    %1538 = vmatprep.subr.mxu0 0.0
    %1539 = vmatpush1.msra.mxu0 0.0
    %1540 = vmatprep.subr.mxu0 0.0
    %1541 = vmatpush1.msra.mxu0 0.0
    %1542 = vmatprep.subr.mxu0 0.0
    %1543 = vmatpush1.msra.mxu0 0.0
    %1544 = vmatprep.subr.mxu0 0.0
    %1545 = vmatpush1.msra.mxu0 %v1494
    %1546 = vmatprep.subr.mxu0 0.0
    %1547 = vmatpush1.msra.mxu0 %v1493
    %1548 = vmatprep.subr.mxu0 0.0
    %1549 = vmatpush1.msra.mxu0 %v1492
    %1550 = vmatprep.subr.mxu0 0.0
    %1551 = vmatpush1.msra.mxu0 %v1491
    %1552 = vmatprep.subr.mxu0 0.0
    %1553 = vmatpush1.msra.mxu0 %v1490
    %1554 = vmatprep.subr.mxu0 0.0
    %1555 = vmatpush1.msra.mxu0 %v1489
    %1556 = vmatprep.subr.mxu0 0.0
    %1557 = vmatpush1.msra.mxu0 %v1488
    %1558 = vmatprep.subr.mxu0 0.0
    %1559 = vmatpush1.msra.mxu0 %v1487
    %1560 = vmatprep.subr.mxu0 0.0
    %1561 = vmatpush1.msra.mxu0 %v1486
    %1562 = vmatprep.subr.mxu0 0.0
    %1563 = vmatpush1.msra.mxu0 %v1485
    %1564 = vmatprep.subr.mxu0 0.0
    %1565 = vmatpush1.msra.mxu0 %v1484
    %1566 = vmatprep.subr.mxu0 0.0
    %1567 = vmatpush1.msra.mxu0 %v1483
    %1568 = vmatprep.subr.mxu0 0.0
    %1569 = vmatpush2.msra.mxu0 0.0
    %1570 = vmatprep.subr.mxu0 0.0
    %1571 = vmatpush2.msra.mxu0 0.0
    %1572 = vmatprep.subr.mxu0 0.0
    %1573 = vmatpush2.msra.mxu0 0.0
    %1574 = vmatprep.subr.mxu0 0.0
    %1575 = vmatpush2.msra.mxu0 0.0
    %1576 = vmatprep.subr.mxu0 0.0
    %1577 = vmatpush2.msra.mxu0 0.0
    %1578 = vmatprep.subr.mxu0 0.0
    %1579 = vmatpush2.msra.mxu0 0.0
    %1580 = vmatprep.subr.mxu0 0.0
    %1581 = vmatpush2.msra.mxu0 0.0
    %1582 = vmatprep.subr.mxu0 0.0
    %1583 = vmatpush2.msra.mxu0 0.0
    %1584 = vmatprep.subr.mxu0 0.0
    %1585 = vmatpush2.msra.mxu0 0.0
    %1586 = vmatprep.subr.mxu0 0.0
    %1587 = vmatpush2.msra.mxu0 0.0
    %1588 = vmatprep.subr.mxu0 0.0
    %1589 = vmatpush2.msra.mxu0 0.0
    %1590 = vmatprep.subr.mxu0 0.0
    %1591 = vmatpush2.msra.mxu0 0.0
    %1592 = vmatprep.subr.mxu0 0.0
    %1593 = vmatpush2.msra.mxu0 0.0
    %1594 = vmatprep.subr.mxu0 0.0
    %1595 = vmatpush2.msra.mxu0 0.0
    %1596 = vmatprep.subr.mxu0 0.0
    %1597 = vmatpush2.msra.mxu0 0.0
    %1598 = vmatprep.subr.mxu0 0.0
    %1599 = vmatpush2.msra.mxu0 0.0
    %1600 = vmatprep.mubr.f32.mxu0 0.0
    %1601 = vmatmul.mubr.f32.gmra.mxu0 %v1525
    %v1602 = vpop.f32.mrf.mxu0
    %v1603 = vadd.f32 %v1506, %v1602
    %v1604 = vpop.f32.mrf.mxu0
    %1605 = vmatprep.mubr.f32.mxu0 0.0
    %1606 = vmatmul.mubr.f32.gmra.mxu0 %v1528
    %v1607 = vpop.f32.mrf.mxu0
    %v1608 = vadd.f32 %v1511, %v1607
    %v1609 = vpop.f32.mrf.mxu0
    %1610 = vmatprep.mubr.f32.mxu0 0.0
    %1611 = vmatmul.mubr.f32.gmra.mxu0 %v1531
    %v1612 = vpop.f32.mrf.mxu0
    %v1613 = vadd.f32 %v1516, %v1612
    %v1614 = vpop.f32.mrf.mxu0
    %1615 = vmatprep.mubr.f32.mxu0 0.0
    %1616 = vmatmul.mubr.f32.gmra.mxu0 %v1534
    %v1617 = vpop.f32.mrf.mxu0
    %v1618 = vadd.f32 %v1521, %v1617
    %v1619 = vpop.f32.mrf.mxu0
    %1620 = vdwg.mxu0
    %vm1621 = vcmask 64512
    %v1622 = vsel %vm1621, %v1603, -inf
    %v1623 = vsel %vm1621, %v1608, -inf
    %v1624 = vsel %vm1621, %v1613, -inf
    %v1625 = vsel %vm1621, %v1618, -inf
    %v1626 = vmax.f32 %v1622, %v1623
    %v1627 = vmax.f32 %v1624, %v1625
    %v1628 = vmax.f32 %v1626, %v1627
    %v1629 = vsub.f32 %v1603, %v1628
    %v1630 = vsub.f32 %v1608, %v1628
    %v1631 = vsub.f32 %v1613, %v1628
    %v1632 = vsub.f32 %v1618, %v1628
    %v1633 = vmul.f32 %v1629, 1.442695
    %v1634 = vpow.pop %v1633
    %v1635 = vmul.f32 %v1630, 1.442695
    %v1636 = vpow.pop %v1635
    %v1637 = vmul.f32 %v1631, 1.442695
    %v1638 = vpow.pop %v1637
    %v1639 = vmul.f32 %v1632, 1.442695
    %v1640 = vpow.pop %v1639
    %v1641 = vsel %vm1621, %v1634, 0.0
    %v1642 = vsel %vm1621, %v1636, 0.0
    %v1643 = vadd.f32 %v1641, %v1642
    %v1644 = vsel %vm1621, %v1638, 0.0
    %v1645 = vadd.f32 %v1643, %v1644
    %v1646 = vsel %vm1621, %v1640, 0.0
    %v1647 = vadd.f32 %v1645, %v1646
    %v1648 = vrcp.pop %v1647
    %v1649 = vmul.f32 %v1634, %v1648
    %v1650 = vmul.f32 %v1636, %v1648
    %v1651 = vmul.f32 %v1638, %v1648
    %v1652 = vmul.f32 %v1640, %v1648
    %v1653 = vlog2.pop %v1647
    %v1654 = vmul.f32 %v1653, 0.6931472
    %v1655 = vsub.f32 %v1629, %v1654
    %v1656 = vsub.f32 %v1630, %v1654
    %v1657 = vsub.f32 %v1631, %v1654
    %v1658 = vsub.f32 %v1632, %v1654
    %v1659 = vsub.f32 -1.3862944, %v1655
    %v1660 = vsub.f32 -1.3862944, %v1656
    %v1661 = vsub.f32 -1.3862944, %v1657
    %v1662 = vsub.f32 -1.3862944, %v1658
    %v1663 = vmul.f32 %v1659, 0.25
    %v1664 = vmul.f32 %v1660, 0.25
    %v1665 = vmul.f32 %v1661, 0.25
    %v1666 = vmul.f32 %v1662, 0.25
    %v1667 = vsel %vm1621, %v1663, 0.0
    %v1668 = vsel %vm1621, %v1664, 0.0
    %v1669 = vadd.f32 %v1667, %v1668
    %v1670 = vsel %vm1621, %v1665, 0.0
    %v1671 = vadd.f32 %v1669, %v1670
    %v1672 = vsel %vm1621, %v1666, 0.0
    %v1673 = vadd.f32 %v1671, %v1672
    %1674 = vadd.xlane.f32.xlu0 %v1673
    %v1675 = vpop.xlane.xlu0 %1674
    %v1676 = vrot.slane %v1675, 4
    %v1677 = vadd.f32 %v1675, %v1676
    %v1678 = vrot.slane %v1677, 2
    %v1679 = vadd.f32 %v1677, %v1678
    %v1680 = vrot.slane %v1679, 1
    %v1681 = vadd.f32 %v1679, %v1680
    %s1682 = vtos %v1681
    %s1683 = smul.f32 %s1682, 0.000125
    %s1684 = scalar_lea.smem [#allocation5], 0
    %1685 = sst [smem:[%s1684]] %s1683
    %v1686 = vsel %vm1621, %v1649, -inf
    %v1687 = vsel %vm1621, %v1650, -inf
    %v1688 = vsel %vm1621, %v1651, -inf
    %v1689 = vsel %vm1621, %v1652, -inf
    %v1690 = vmax.f32 %v1686, %v1687
    %v1691 = vmax.f32 %v1688, %v1689
    %v1692 = vmax.f32 %v1690, %v1691
    %vm1693 = vcmp.eq.f32.partialorder %v1649, %v1692
    %vm1694 = vcmp.eq.f32.partialorder %v1650, %v1692
    %vm1695 = vcmp.eq.f32.partialorder %v1651, %v1692
    %vm1696 = vcmp.eq.f32.partialorder %v1652, %v1692
    %v1697 = vsel %vm1693, 0, 4
    %v1698 = vsel %vm1694, 1, 4
    %v1699 = vsel %vm1695, 2, 4
    %v1700 = vsel %vm1696, 3, 4
    %v1701 = vsel %vm1621, %v1697, 2147483647
    %v1702 = vsel %vm1621, %v1698, 2147483647
    %v1703 = vsel %vm1621, %v1699, 2147483647
    %v1704 = vsel %vm1621, %v1700, 2147483647
    %vm1705 = vcmp.lt.s32.totalorder %v1701, %v1702
    %v1706 = vsel %vm1705, %v1701, %v1702
    %vm1707 = vcmp.lt.s32.totalorder %v1703, %v1704
    %v1708 = vsel %vm1707, %v1703, %v1704
    %vm1709 = vcmp.lt.s32.totalorder %v1706, %v1708
    %v1710 = vsel %vm1709, %v1706, %v1708
    %vm1711 = vcmp.eq.s32.totalorder %v1710, 0
    %vm1712 = vcmp.eq.s32.totalorder %v1710, 1
    %vm1713 = vcmp.eq.s32.totalorder %v1710, 2
    %vm1714 = vcmp.eq.s32.totalorder %v1710, 3
    %v1715 = vsel %vm1711, %v1649, 0.0
    %v1716 = vsel %vm1712, %v1650, 0.0
    %v1717 = vsel %vm1713, %v1651, 0.0
    %v1718 = vsel %vm1714, %v1652, 0.0
    %v1719 = vadd.f32 %v1715, 0.0
    %v1720 = vadd.f32 %v1716, 0.0
    %v1721 = vadd.f32 %v1717, 0.0
    %v1722 = vadd.f32 %v1718, 0.0
    %v1723 = vsel %vm1711, -inf, %v1649
    %v1724 = vsel %vm1712, -inf, %v1650
    %v1725 = vsel %vm1713, -inf, %v1651
    %v1726 = vsel %vm1714, -inf, %v1652
    %v1727 = vsel %vm1621, %v1723, -inf
    %v1728 = vsel %vm1621, %v1724, -inf
    %v1729 = vsel %vm1621, %v1725, -inf
    %v1730 = vsel %vm1621, %v1726, -inf
    %v1731 = vmax.f32 %v1727, %v1728
    %v1732 = vmax.f32 %v1729, %v1730
    %v1733 = vmax.f32 %v1731, %v1732
    %vm1734 = vcmp.eq.f32.partialorder %v1723, %v1733
    %vm1735 = vcmp.eq.f32.partialorder %v1724, %v1733
    %vm1736 = vcmp.eq.f32.partialorder %v1725, %v1733
    %vm1737 = vcmp.eq.f32.partialorder %v1726, %v1733
    %v1738 = vsel %vm1734, 0, 4
    %v1739 = vsel %vm1735, 1, 4
    %v1740 = vsel %vm1736, 2, 4
    %v1741 = vsel %vm1737, 3, 4
    %v1742 = vsel %vm1621, %v1738, 2147483647
    %v1743 = vsel %vm1621, %v1739, 2147483647
    %v1744 = vsel %vm1621, %v1740, 2147483647
    %v1745 = vsel %vm1621, %v1741, 2147483647
    %vm1746 = vcmp.lt.s32.totalorder %v1742, %v1743
    %v1747 = vsel %vm1746, %v1742, %v1743
    %vm1748 = vcmp.lt.s32.totalorder %v1744, %v1745
    %v1749 = vsel %vm1748, %v1744, %v1745
    %vm1750 = vcmp.lt.s32.totalorder %v1747, %v1749
    %v1751 = vsel %vm1750, %v1747, %v1749
    %vm1752 = vcmp.eq.s32.totalorder %v1751, 0
    %vm1753 = vcmp.eq.s32.totalorder %v1751, 1
    %vm1754 = vcmp.eq.s32.totalorder %v1751, 2
    %vm1755 = vcmp.eq.s32.totalorder %v1751, 3
    %v1756 = vsel %vm1752, %v1649, 0.0
    %v1757 = vsel %vm1753, %v1650, 0.0
    %v1758 = vsel %vm1754, %v1651, 0.0
    %v1759 = vsel %vm1755, %v1652, 0.0
    %v1760 = vadd.f32 %v1719, %v1756
    %v1761 = vadd.f32 %v1720, %v1757
    %v1762 = vadd.f32 %v1721, %v1758
    %v1763 = vadd.f32 %v1722, %v1759
    %v1764 = vsel %vm1621, %v1760, 0.0
    %v1765 = vsel %vm1621, %v1761, 0.0
    %v1766 = vadd.f32 %v1764, %v1765
    %v1767 = vsel %vm1621, %v1762, 0.0
    %v1768 = vadd.f32 %v1766, %v1767
    %v1769 = vsel %vm1621, %v1763, 0.0
    %v1770 = vadd.f32 %v1768, %v1769
    %v1771 = vrcp.pop %v1770
    %v1772 = vmul.f32 %v1760, %v1771
    %v1773 = vmul.f32 %v1761, %v1771
    %v1774 = vmul.f32 %v1762, %v1771
    %v1775 = vmul.f32 %v1763, %v1771
    %v1776 = vld [vmem:[%s4] sm:$0xff]
    %v1777 = vld [vmem:[%s4 + $0x8] sm:$0xff]
    %v1778 = vld [vmem:[%s4 + $0x10] sm:$0xff]
    %v1779 = vld [vmem:[%s4 + $0x18] sm:$0xff]
    %v1780 = vld [vmem:[%s3] sm:$0xff]
    %v1781 = vld [vmem:[%s3 + $0x8] sm:$0xff]
    %v1782 = vld [vmem:[%s3 + $0x10] sm:$0x1]
    %vm1783 = vcmask 138240
    %v1785 = vsel %vm1783, %v1776, 0
    %v1788 = vsel %vm1783, %v1777, 0
    %v1791 = vsel %vm1783, %v1778, 0
    %v1794 = vsel %vm1783, %v1779, 0
    %vm1796 = vcmask 1040384
    %v1798 = vsel %vm1796, %v1782, 0
    %1800 = vmatprep.subr.mxu0 0.0
    %1801 = vmatpush1.msra.mxu0 0.0
    %1802 = vmatprep.subr.mxu0 0.0
    %1803 = vmatpush1.msra.mxu0 0.0
    %1804 = vmatprep.subr.mxu0 0.0
    %1805 = vmatpush1.msra.mxu0 0.0
    %1806 = vmatprep.subr.mxu0 0.0
    %1807 = vmatpush1.msra.mxu0 0.0
    %1808 = vmatprep.subr.mxu0 0.0
    %1809 = vmatpush1.msra.mxu0 0.0
    %1810 = vmatprep.subr.mxu0 0.0
    %1811 = vmatpush1.msra.mxu0 0.0
    %1812 = vmatprep.subr.mxu0 0.0
    %1813 = vmatpush1.msra.mxu0 0.0
    %1814 = vmatprep.subr.mxu0 0.0
    %1815 = vmatpush1.msra.mxu0 0.0
    %1816 = vmatprep.subr.mxu0 0.0
    %1817 = vmatpush1.msra.mxu0 0.0
    %1818 = vmatprep.subr.mxu0 0.0
    %1819 = vmatpush1.msra.mxu0 0.0
    %1820 = vmatprep.subr.mxu0 0.0
    %1821 = vmatpush1.msra.mxu0 0.0
    %1822 = vmatprep.subr.mxu0 0.0
    %1823 = vmatpush1.msra.mxu0 0.0
    %1824 = vmatprep.subr.mxu0 0.0
    %1825 = vmatpush1.msra.mxu0 0.0
    %1826 = vmatprep.subr.mxu0 0.0
    %1827 = vmatpush1.msra.mxu0 %v1798
    %1828 = vmatprep.subr.mxu0 0.0
    %1829 = vmatpush1.msra.mxu0 %v1781
    %1830 = vmatprep.subr.mxu0 0.0
    %1831 = vmatpush1.msra.mxu0 %v1780
    %1832 = vmatprep.subr.mxu0 0.0
    %1833 = vmatpush2.msra.mxu0 0.0
    %1834 = vmatprep.subr.mxu0 0.0
    %1835 = vmatpush2.msra.mxu0 0.0
    %1836 = vmatprep.subr.mxu0 0.0
    %1837 = vmatpush2.msra.mxu0 0.0
    %1838 = vmatprep.subr.mxu0 0.0
    %1839 = vmatpush2.msra.mxu0 0.0
    %1840 = vmatprep.subr.mxu0 0.0
    %1841 = vmatpush2.msra.mxu0 0.0
    %1842 = vmatprep.subr.mxu0 0.0
    %1843 = vmatpush2.msra.mxu0 0.0
    %1844 = vmatprep.subr.mxu0 0.0
    %1845 = vmatpush2.msra.mxu0 0.0
    %1846 = vmatprep.subr.mxu0 0.0
    %1847 = vmatpush2.msra.mxu0 0.0
    %1848 = vmatprep.subr.mxu0 0.0
    %1849 = vmatpush2.msra.mxu0 0.0
    %1850 = vmatprep.subr.mxu0 0.0
    %1851 = vmatpush2.msra.mxu0 0.0
    %1852 = vmatprep.subr.mxu0 0.0
    %1853 = vmatpush2.msra.mxu0 0.0
    %1854 = vmatprep.subr.mxu0 0.0
    %1855 = vmatpush2.msra.mxu0 0.0
    %1856 = vmatprep.subr.mxu0 0.0
    %1857 = vmatpush2.msra.mxu0 0.0
    %1858 = vmatprep.subr.mxu0 0.0
    %1859 = vmatpush2.msra.mxu0 0.0
    %1860 = vmatprep.subr.mxu0 0.0
    %1861 = vmatpush2.msra.mxu0 0.0
    %1862 = vmatprep.subr.mxu0 0.0
    %1863 = vmatpush2.msra.mxu0 0.0
    %1864 = vmatprep.mubr.f32.mxu0 0.0
    %1865 = vmatmul.mubr.f32.gmra.mxu0 %v1785
    %v1866 = vpop.f32.mrf.mxu0
    %v1867 = vadd.f32 0.0, %v1866
    %v1868 = vpop.f32.mrf.mxu0
    %1869 = vmatprep.mubr.f32.mxu0 0.0
    %1870 = vmatmul.mubr.f32.gmra.mxu0 %v1788
    %v1871 = vpop.f32.mrf.mxu0
    %v1872 = vadd.f32 0.0, %v1871
    %v1873 = vpop.f32.mrf.mxu0
    %1874 = vmatprep.mubr.f32.mxu0 0.0
    %1875 = vmatmul.mubr.f32.gmra.mxu0 %v1791
    %v1876 = vpop.f32.mrf.mxu0
    %v1877 = vadd.f32 0.0, %v1876
    %v1878 = vpop.f32.mrf.mxu0
    %1879 = vmatprep.mubr.f32.mxu0 0.0
    %1880 = vmatmul.mubr.f32.gmra.mxu0 %v1794
    %v1881 = vpop.f32.mrf.mxu0
    %v1882 = vadd.f32 0.0, %v1881
    %v1883 = vpop.f32.mrf.mxu0
    %1884 = vdwg.mxu0
    %v1885 = vmul.f32 %v1772, %v1867
    %v1886 = vmul.f32 %v1773, %v1872
    %v1887 = vmul.f32 %v1774, %v1877
    %v1888 = vmul.f32 %v1775, %v1882
    %v1889 = vsel %vm1621, %v1885, 0.0
    %v1890 = vsel %vm1621, %v1886, 0.0
    %v1891 = vadd.f32 %v1889, %v1890
    %v1892 = vsel %vm1621, %v1887, 0.0
    %v1893 = vadd.f32 %v1891, %v1892
    %v1894 = vsel %vm1621, %v1888, 0.0
    %v1895 = vadd.f32 %v1893, %v1894
    %1896 = vst.msk [vmem:[#allocation2] sm:$0xff] %vm1621, %v1895
    // Predicated region
    $region30: #{tpu_custom_call.1} parent=1 // pred_check
      _
    $region31: #{tpu_custom_call.1} parent=1 // pred_check_branch
      %1898 = sbr.rel (0) target = $region33
    $region32: #{tpu_custom_call.1} parent=1 // pred_region
      %s1900 = ssub.s32 128, 128
      %1901 = vsyncadd [#allocation3], %s1900
      %s1903 = sshll.u32 [#allocation2], 4
      %s1904 = int_to_ptr.vmem [resolvable:$true] %s1903
      %1906 = dma.vmem_to_hbm [thread:$0]  %s1904, 128, %s7, [#allocation3]
    $region33: #{tpu_custom_call.1} parent=1 // pred_fallthru
      _
    // Predicated region
    $region34: #{tpu_custom_call.1} parent=1 // pred_check
      _
    $region35: #{tpu_custom_call.1} parent=1 // pred_check_branch
      %1908 = sbr.rel (0) target = $region37
    $region36: #{tpu_custom_call.1} parent=1 // pred_region
      %s1910 = ssub.s32 16, 16
      %1911 = vsyncadd [#allocation4], %s1910
      %1914 = dma.smem_to_hbm [#allocation5], 16, %s8, [#allocation4]
    $region37: #{tpu_custom_call.1} parent=1 // pred_fallthru
      _
    // Predicated region
    $region38: #{tpu_custom_call.1} parent=1 // pred_check
      _
    $region39: #{tpu_custom_call.1} parent=1 // pred_check_branch
      %1916 = sbr.rel (0) target = $region41
    $region40: #{tpu_custom_call.1} parent=1 // pred_region
      %1917 = dma.done [#allocation3], 128
    $region41: #{tpu_custom_call.1} parent=1 // pred_fallthru
      _
    // Predicated region
    $region42: #{tpu_custom_call.1} parent=1 // pred_check
      _
    $region43: #{tpu_custom_call.1} parent=1 // pred_check_branch
      %1919 = sbr.rel (0) target = $region45
    $region44: #{tpu_custom_call.1} parent=1 // pred_region
      %1920 = dma.done [#allocation4], 16
    $region45: #{tpu_custom_call.1} parent=1 // pred_fallthru
      _
    %1921 = sfence
    %1922 = vsyncpa [#allocation3], 1
    %1923 = vsyncpa [#allocation4], 1

</llo_original>
